<compile_context>
chip_gen: v7x
topology: tpu7x:2x2x1
jax: 0.10.0
libtpu: 0.0.40
codegen_flags: <defaults>
</compile_context>

<pallas_src>
import functools

import jax
import jax.numpy as jnp
from jax.experimental import pallas as pl
from jax.experimental.pallas import tpu as pltpu


def _round_up(x, m):
    return (x + m - 1) // m * m


# ----------------------- tiled matmul (qkv projection, no bias) ----------------------- #

def _matmul_kernel(x_ref, w_ref, o_ref, acc_ref):
    @pl.when(pl.program_id(2) == 0)
    def _init():
        acc_ref[...] = jnp.zeros(acc_ref.shape, jnp.float32)

    acc_ref[...] += jnp.dot(x_ref[...], w_ref[...],
                            preferred_element_type=jnp.float32)

    @pl.when(pl.program_id(2) == pl.num_programs(2) - 1)
    def _store():
        o_ref[...] = acc_ref[...].astype(o_ref.dtype)


def pallas_matmul(x, w, out_dtype):
    """x: (M, K), w: (K, N) (pre-transposed vs torch). No bias (qkv projection)."""
    M, K = x.shape
    K2, N = w.shape
    assert K == K2

    # Large, MXU-friendly tiles (multiples of 256 when tiled); full extent when small.
    tm = M if M <= 512 else 512
    tn = N if N <= 512 else 512
    tk = K if K <= 1024 else 1024

    Mp, Kp, Np = _round_up(M, tm), _round_up(K, tk), _round_up(N, tn)
    if (Mp, Kp) != (M, K):
        x = jnp.pad(x, ((0, Mp - M), (0, Kp - K)))
    if (Kp, Np) != (K, N):
        w = jnp.pad(w, ((0, Kp - K), (0, Np - N)))

    grid = (Mp // tm, Np // tn, Kp // tk)
    out = pl.pallas_call(
        _matmul_kernel,
        out_shape=jax.ShapeDtypeStruct((Mp, Np), out_dtype),
        grid_spec=pltpu.PrefetchScalarGridSpec(
            num_scalar_prefetch=0,
            grid=grid,
            in_specs=[
                pl.BlockSpec((tm, tk), lambda i, j, k: (i, k)),
                pl.BlockSpec((tk, tn), lambda i, j, k: (k, j)),
            ],
            out_specs=pl.BlockSpec((tm, tn), lambda i, j, k: (i, j)),
            scratch_shapes=[pltpu.VMEM((tm, tn), jnp.float32)],
        ),
        compiler_params=pltpu.CompilerParams(
            dimension_semantics=("parallel", "parallel", "arbitrary")),
    )(x, w)
    if (Mp, Np) != (M, N):
        out = out[:M, :N]
    return out


# -------------------- head-batched flash attention + fused out-proj -------------------- #

def _fused_attn_kernel(*refs, num_heads, project_out, have_kv_mask):
    idx = 0
    q_ref, k_ref, v_ref = refs[0], refs[1], refs[2]
    idx = 3
    if have_kv_mask:
        kvb_ref = refs[idx]
        idx += 1
    else:
        kvb_ref = None
    if project_out:
        wout_ref, bout_ref = refs[idx], refs[idx + 1]
        idx += 2
    else:
        wout_ref = bout_ref = None
    o_ref = refs[idx]
    m_sc, l_sc, acc_sc = refs[idx + 1], refs[idx + 2], refs[idx + 3]

    ki = pl.program_id(2)

    @pl.when(ki == 0)
    def _init():
        m_sc[...] = jnp.full(m_sc.shape, -1e30, jnp.float32)
        l_sc[...] = jnp.zeros(l_sc.shape, jnp.float32)
        acc_sc[...] = jnp.zeros(acc_sc.shape, jnp.float32)

    q = q_ref[0]          # (h, tq, d) bf16 (scale pre-folded into W_qkv)
    k = k_ref[0]          # (h, tk, d) bf16
    v = v_ref[0]          # (h, tk, d) bf16

    # Head-batched QK^T, contracting on d directly (no transpose feeding the MXU).
    s = jnp.einsum('hqd,hkd->hqk', q, k,
                   preferred_element_type=jnp.float32)         # (h, tq, tk) f32

    if kvb_ref is not None:
        # Additive padding mask: 0 on valid kv columns, -1e30 on padded ones.
        s = s + kvb_ref[...]                                   # (1, tk) broadcast add

    m_prev = m_sc[...]                                         # (h, tq, 1)
    m_new = jnp.maximum(m_prev, jnp.max(s, axis=-1, keepdims=True))
    alpha = jnp.exp(m_prev - m_new)
    p = jnp.exp(s - m_new)                                     # (h, tq, tk) f32
    l_sc[...] = alpha * l_sc[...] + jnp.sum(p, axis=-1, keepdims=True)
    pv = jnp.einsum('hqk,hkd->hqd', p.astype(v.dtype), v,
                    preferred_element_type=jnp.float32)        # (h, tq, d) f32
    acc_sc[...] = alpha * acc_sc[...] + pv
    m_sc[...] = m_new

    @pl.when(ki == pl.num_programs(2) - 1)
    def _finalize():
        inv_l = pl.reciprocal(l_sc[...], approx=False)         # exact; once per q tile
        attn = acc_sc[...] * inv_l                             # (h, tq, d) f32
        if project_out:
            attn_c = attn.astype(wout_ref.dtype)               # bf16 MXU inputs
            # Fused output projection: sum_h attn_h @ W_out_h (+ bias), written lane-dense.
            proj = jnp.dot(attn_c[0], wout_ref[0],
                           preferred_element_type=jnp.float32)
            for hi in range(1, num_heads):
                proj = proj + jnp.dot(attn_c[hi], wout_ref[hi],
                                      preferred_element_type=jnp.float32)
            o_ref[0] = (proj + bout_ref[...]).astype(o_ref.dtype)
        else:
            # project_out=False implies heads == 1 and dim_head == dim (nn.Identity).
            o_ref[0] = attn[0].astype(o_ref.dtype)


def pallas_fused_attention(qkv, *, heads, dim_head, w_out, b_out, project_out, out_dtype):
    """qkv: (b, 3h, n, d) bf16, head-major. Returns (b, n, dim_out)."""
    b, three_h, n, d = qkv.shape
    h = heads
    assert three_h == 3 * h and d == dim_head
    inner = h * d
    dim_out = w_out.shape[-1] if project_out else inner

    # Sequence tiling: single full-extent tile for short sequences (no padding/masking),
    # flash-style tq=128 / tk=256 otherwise (256-deep contraction fills the v6e/v7x MXU).
    if n <= 256:
        tq = tk = n
        n_pad = n
    else:
        tq, tk = 128, 256
        n_pad = _round_up(n, 256)

    need_mask = n_pad != n
    if need_mask:
        qkv = jnp.pad(qkv, ((0, 0), (0, 0), (0, n_pad - n), (0, 0)))

    grid = (b, n_pad // tq, n_pad // tk)

    # q heads occupy rows [0, h) of the 3h axis, k heads [h, 2h), v heads [2h, 3h);
    # block size h along that axis picks them via block index 0 / 1 / 2.
    in_specs = [
        pl.BlockSpec((1, h, tq, d), lambda bi, qi, ki: (bi, 0, qi, 0)),
        pl.BlockSpec((1, h, tk, d), lambda bi, qi, ki: (bi, 1, ki, 0)),
        pl.BlockSpec((1, h, tk, d), lambda bi, qi, ki: (bi, 2, ki, 0)),
    ]
    args = [qkv, qkv, qkv]

    if need_mask:
        kv_bias = jnp.where(jnp.arange(n_pad) < n, 0.0, -1e30)
        kv_bias = kv_bias.astype(jnp.float32).reshape(1, n_pad)
        in_specs.append(pl.BlockSpec((1, tk), lambda bi, qi, ki: (0, ki)))
        args.append(kv_bias)

    if project_out:
        w3 = w_out.reshape(h, d, dim_out)          # resident in VMEM across the whole grid
        b2 = b_out.astype(jnp.float32).reshape(1, dim_out)
        in_specs.append(pl.BlockSpec((h, d, dim_out), lambda bi, qi, ki: (0, 0, 0)))
        in_specs.append(pl.BlockSpec((1, dim_out), lambda bi, qi, ki: (0, 0)))
        args.extend([w3, b2])

    kernel = functools.partial(_fused_attn_kernel, num_heads=h,
                               project_out=project_out, have_kv_mask=need_mask)

    out = pl.pallas_call(
        kernel,
        out_shape=jax.ShapeDtypeStruct((b, n_pad, dim_out), out_dtype),
        grid_spec=pltpu.PrefetchScalarGridSpec(
            num_scalar_prefetch=0,
            grid=grid,
            in_specs=in_specs,
            # Output written once per (b, q-tile), lane-dense over the model dim,
            # constant across the kv (reduction) axis.
            out_specs=pl.BlockSpec((1, tq, dim_out), lambda bi, qi, ki: (bi, qi, 0)),
            scratch_shapes=[
                pltpu.VMEM((h, tq, 1), jnp.float32),   # running max
                pltpu.VMEM((h, tq, 1), jnp.float32),   # running sum
                pltpu.VMEM((h, tq, d), jnp.float32),   # output accumulator
            ],
        ),
        compiler_params=pltpu.CompilerParams(
            dimension_semantics=("parallel", "parallel", "arbitrary")),
    )(*args)

    if need_mask:
        out = out[:, :n, :]
    return out


# ------------------------------------ jitted forward ------------------------------------ #

@functools.partial(jax.jit, static_argnames=("heads", "dim_head", "project_out"))
def _attention_forward(x, w_qkv, w_out, b_out, heads, dim_head, project_out):
    b, n, dim = x.shape
    h, d = heads, dim_head
    inner = h * d

    # Fused qkv projection (bf16 MXU inputs, f32 accumulation, bf16 intermediate).
    xm = x.reshape(b * n, dim).astype(jnp.bfloat16)
    qkv = pallas_matmul(xm, w_qkv, out_dtype=jnp.bfloat16)       # (b*n, 3*inner)

    # One XLA transpose to the head-major layout the flash kernel wants: (b, 3h, n, d).
    qkv = qkv.reshape(b, n, 3, h, d).transpose(0, 2, 3, 1, 4).reshape(b, 3 * h, n, d)

    # Flash attention + fused output projection; writes (b, n, dim_out) directly.
    out = pallas_fused_attention(qkv, heads=h, dim_head=d,
                                 w_out=w_out, b_out=b_out,
                                 project_out=project_out, out_dtype=x.dtype)
    return out


# --------------------------------------- module ----------------------------------------- #

class AttentionPallas:
    """JAX/Pallas counterpart of the PyTorch `Attention` module (eval semantics, mask=None)."""

    def __init__(self, dim, heads=8, dim_head=64, dropout=0.0, *, key):
        inner_dim = dim_head * heads
        self.heads = heads
        self.dim_head = dim_head
        self.dim = dim
        self.scale = dim_head ** (-0.5)
        self.project_out = not (heads == 1 and dim_head == dim)

        k1, k2, k3 = jax.random.split(key, 3)
        # Weight stored PRE-TRANSPOSED ((in, out)) vs torch.nn.Linear ((out, in)),
        # pre-cast to bf16, with the softmax scale folded into the q columns once.
        w_qkv = jax.random.normal(k1, (dim, inner_dim * 3), jnp.float32) / jnp.sqrt(dim)
        w_qkv = w_qkv.at[:, :inner_dim].multiply(self.scale)
        self.w_qkv = w_qkv.astype(jnp.bfloat16)
        if self.project_out:
            w_out = jax.random.normal(k2, (inner_dim, dim), jnp.float32) / jnp.sqrt(inner_dim)
            self.w_out = w_out.astype(jnp.bfloat16)
            self.b_out = jax.random.normal(k3, (dim,), jnp.float32) * 0.01
        else:
            self.w_out = None
            self.b_out = None
        # dropout p=0.0 -> identity (eval semantics).

    def __call__(self, x, mask=None):
        # TODO(synk): optional CLS-token `mask` branch not implemented (mask must be None).
        assert mask is None
        return _attention_forward(x, self.w_qkv, self.w_out, self.b_out,
                                  heads=self.heads, dim_head=self.dim_head,
                                  project_out=self.project_out)


# ----------------------------------------- main ------------------------------------------ #

if __name__ == "__main__":
    key = jax.random.PRNGKey(0)
    k_param, k_x = jax.random.split(key)

    batch, seq, dim = 2, 8, 32
    heads, dim_head = 4, 16

    module = AttentionPallas(dim, heads=heads, dim_head=dim_head, dropout=0.0,
                             key=k_param)

    x = jax.random.normal(k_x, (batch, seq, dim), jnp.float32)

    out = module(x)
    out = jax.block_until_ready(out)
    assert out.shape == (batch, seq, dim), out.shape
    assert bool(jnp.all(jnp.isfinite(out)))
    print("KERNEL_OK")
</pallas_src>

<mosaic_0001>
module attributes {stable_mosaic.version = 11 : i64} {
  func.func @_matmul_kernel(%arg0: i32, %arg1: i32, %arg2: i32, %arg3: memref<16x32xbf16, #tpu.memory_space<vmem>>, %arg4: memref<32x192xbf16, #tpu.memory_space<vmem>>, %arg5: memref<16x192xbf16, #tpu.memory_space<vmem>>, %arg6: memref<16x192xf32, #tpu.memory_space<vmem>>) attributes {dimension_semantics = [#tpu.dimension_semantics<parallel>, #tpu.dimension_semantics<parallel>, #tpu.dimension_semantics<arbitrary>], iteration_bounds = array<i64: 1, 1, 1>, scalar_prefetch = 0 : i64, scratch_operands = 1 : i64, tpu.core_type = #tpu.core_type<tc>, window_params = [{transform_indices = @transform_0, window_bounds = array<i64: 16, 32>}, {transform_indices = @transform_1, window_bounds = array<i64: 32, 192>}, {transform_indices = @transform_2, window_bounds = array<i64: 16, 192>}]} {
    %c0_i32 = arith.constant 0 : i32
    %0 = arith.cmpi eq, %arg2, %c0_i32 : i32
    %1 = arith.extui %0 : i1 to i32
    %c0_i32_0 = arith.constant 0 : i32
    %2 = arith.cmpi ne, %1, %c0_i32_0 : i32
    scf.if %2 {
      %cst_10 = arith.constant 0.000000e+00 : f32
      %12 = vector.broadcast %cst_10 : f32 to vector<16x192xf32>
      %c0_11 = arith.constant 0 : index
      %c0_12 = arith.constant 0 : index
      %13 = vector.load %arg6[%c0_11, %c0_12] : memref<16x192xf32, #tpu.memory_space<vmem>>, vector<16x192xf32>
      tpu.vector_store %arg6[%c0_11, %c0_12], %12 {strides = array<i32>} : memref<16x192xf32, #tpu.memory_space<vmem>>, vector<16x192xf32>,
    } else {
    }
    %c0 = arith.constant 0 : index
    %c0_1 = arith.constant 0 : index
    %3 = vector.load %arg6[%c0, %c0_1] : memref<16x192xf32, #tpu.memory_space<vmem>>, vector<16x192xf32>
    %c0_2 = arith.constant 0 : index
    %c0_3 = arith.constant 0 : index
    %4 = vector.load %arg3[%c0_2, %c0_3] : memref<16x32xbf16, #tpu.memory_space<vmem>>, vector<16x32xbf16>
    %c0_4 = arith.constant 0 : index
    %c0_5 = arith.constant 0 : index
    %5 = vector.load %arg4[%c0_4, %c0_5] : memref<32x192xbf16, #tpu.memory_space<vmem>>, vector<32x192xbf16>
    %cst = arith.constant dense<0.000000e+00> : vector<16x192xf32>
    %6 = tpu.matmul %4, %5, %cst {dimension_numbers = #tpu.dot_dimension_numbers<[1], [0], [0], [1], [0, 0, 1, 1], [], []>} : vector<16x32xbf16>, vector<32x192xbf16>, vector<16x192xf32> -> vector<16x192xf32>
    %7 = arith.addf %3, %6 : vector<16x192xf32>
    %c0_6 = arith.constant 0 : index
    %c0_7 = arith.constant 0 : index
    %8 = vector.load %arg6[%c0_6, %c0_7] : memref<16x192xf32, #tpu.memory_space<vmem>>, vector<16x192xf32>
    tpu.vector_store %arg6[%c0_6, %c0_7], %7 {strides = array<i32>} : memref<16x192xf32, #tpu.memory_space<vmem>>, vector<16x192xf32>,
    %c0_i32_8 = arith.constant 0 : i32
    %9 = arith.cmpi eq, %arg2, %c0_i32_8 : i32
    %10 = arith.extui %9 : i1 to i32
    %c0_i32_9 = arith.constant 0 : i32
    %11 = arith.cmpi ne, %10, %c0_i32_9 : i32
    scf.if %11 {
      %c0_10 = arith.constant 0 : index
      %c0_11 = arith.constant 0 : index
      %12 = vector.load %arg6[%c0_10, %c0_11] : memref<16x192xf32, #tpu.memory_space<vmem>>, vector<16x192xf32>
      %13 = arith.truncf %12 : vector<16x192xf32> to vector<16x192xbf16>
      %c0_12 = arith.constant 0 : index
      %c0_13 = arith.constant 0 : index
      %14 = vector.load %arg5[%c0_12, %c0_13] : memref<16x192xbf16, #tpu.memory_space<vmem>>, vector<16x192xbf16>
      tpu.vector_store %arg5[%c0_12, %c0_13], %13 {strides = array<i32>} : memref<16x192xbf16, #tpu.memory_space<vmem>>, vector<16x192xbf16>,
    } else {
    }
    return
  }
  func.func @transform_0(%arg0: i32, %arg1: i32, %arg2: i32) -> (i32, i32) {
    %c0_i32 = arith.constant 0 : i32
    return %arg0, %arg2 : i32, i32
  }
  func.func @transform_1(%arg0: i32, %arg1: i32, %arg2: i32) -> (i32, i32) {
    %c0_i32 = arith.constant 0 : i32
    return %arg2, %arg1 : i32, i32
  }
  func.func @transform_2(%arg0: i32, %arg1: i32, %arg2: i32) -> (i32, i32) {
    %c0_i32 = arith.constant 0 : i32
    return %arg0, %arg1 : i32, i32
  }
}

module attributes {stable_mosaic.version = 11 : i64} {
  func.func @_fused_attn_kernel(%arg0: i32, %arg1: i32, %arg2: i32, %arg3: memref<1x4x8x16xbf16, #tpu.memory_space<vmem>>, %arg4: memref<1x4x8x16xbf16, #tpu.memory_space<vmem>>, %arg5: memref<1x4x8x16xbf16, #tpu.memory_space<vmem>>, %arg6: memref<4x16x32xbf16, #tpu.memory_space<vmem>>, %arg7: memref<1x32xf32, #tpu.memory_space<vmem>>, %arg8: memref<1x8x32xf32, #tpu.memory_space<vmem>>, %arg9: memref<4x8x1xf32, #tpu.memory_space<vmem>>, %arg10: memref<4x8x1xf32, #tpu.memory_space<vmem>>, %arg11: memref<4x8x16xf32, #tpu.memory_space<vmem>>) attributes {dimension_semantics = [#tpu.dimension_semantics<parallel>, #tpu.dimension_semantics<parallel>, #tpu.dimension_semantics<arbitrary>], iteration_bounds = array<i64: 2, 1, 1>, scalar_prefetch = 0 : i64, scratch_operands = 3 : i64, tpu.core_type = #tpu.core_type<tc>, window_params = [{transform_indices = @transform_0, window_bounds = array<i64: 1, 4, 8, 16>}, {transform_indices = @transform_1, window_bounds = array<i64: 1, 4, 8, 16>}, {transform_indices = @transform_2, window_bounds = array<i64: 1, 4, 8, 16>}, {pipeline_mode = #tpu.pipeline_mode<synchronous>, transform_indices = @transform_3, window_bounds = array<i64: 4, 16, 32>}, {pipeline_mode = #tpu.pipeline_mode<synchronous>, transform_indices = @transform_4, window_bounds = array<i64: 1, 32>}, {transform_indices = @transform_5, window_bounds = array<i64: 1, 8, 32>}]} {
    %c0_i32 = arith.constant 0 : i32
    %0 = arith.cmpi eq, %arg2, %c0_i32 : i32
    %1 = arith.extui %0 : i1 to i32
    %c0_i32_0 = arith.constant 0 : i32
    %2 = arith.cmpi ne, %1, %c0_i32_0 : i32
    scf.if %2 {
      %cst_35 = arith.constant -1.000000e+30 : f32
      %36 = vector.broadcast %cst_35 : f32 to vector<4x8x1xf32>
      %c0_36 = arith.constant 0 : index
      %c0_37 = arith.constant 0 : index
      %c0_38 = arith.constant 0 : index
      %37 = vector.load %arg9[%c0_36, %c0_37, %c0_38] : memref<4x8x1xf32, #tpu.memory_space<vmem>>, vector<4x8x1xf32>
      tpu.vector_store %arg9[%c0_36, %c0_37, %c0_38], %36 {strides = array<i32>} : memref<4x8x1xf32, #tpu.memory_space<vmem>>, vector<4x8x1xf32>,
      %cst_39 = arith.constant 0.000000e+00 : f32
      %38 = vector.broadcast %cst_39 : f32 to vector<4x8x1xf32>
      %c0_40 = arith.constant 0 : index
      %c0_41 = arith.constant 0 : index
      %c0_42 = arith.constant 0 : index
      %39 = vector.load %arg10[%c0_40, %c0_41, %c0_42] : memref<4x8x1xf32, #tpu.memory_space<vmem>>, vector<4x8x1xf32>
      tpu.vector_store %arg10[%c0_40, %c0_41, %c0_42], %38 {strides = array<i32>} : memref<4x8x1xf32, #tpu.memory_space<vmem>>, vector<4x8x1xf32>,
      %cst_43 = arith.constant 0.000000e+00 : f32
      %40 = vector.broadcast %cst_43 : f32 to vector<4x8x16xf32>
      %c0_44 = arith.constant 0 : index
      %c0_45 = arith.constant 0 : index
      %c0_46 = arith.constant 0 : index
      %41 = vector.load %arg11[%c0_44, %c0_45, %c0_46] : memref<4x8x16xf32, #tpu.memory_space<vmem>>, vector<4x8x16xf32>
      tpu.vector_store %arg11[%c0_44, %c0_45, %c0_46], %40 {strides = array<i32>} : memref<4x8x16xf32, #tpu.memory_space<vmem>>, vector<4x8x16xf32>,
    } else {
    }
    %c0 = arith.constant 0 : index
    %c0_1 = arith.constant 0 : index
    %c0_2 = arith.constant 0 : index
    %c0_3 = arith.constant 0 : index
    %3 = vector.load %arg3[%c0, %c0_1, %c0_2, %c0_3] : memref<1x4x8x16xbf16, #tpu.memory_space<vmem>>, vector<1x4x8x16xbf16>
    %4 = vector.shape_cast %3 : vector<1x4x8x16xbf16> to vector<4x8x16xbf16>
    %c0_4 = arith.constant 0 : index
    %c0_5 = arith.constant 0 : index
    %c0_6 = arith.constant 0 : index
    %c0_7 = arith.constant 0 : index
    %5 = vector.load %arg4[%c0_4, %c0_5, %c0_6, %c0_7] : memref<1x4x8x16xbf16, #tpu.memory_space<vmem>>, vector<1x4x8x16xbf16>
    %6 = vector.shape_cast %5 : vector<1x4x8x16xbf16> to vector<4x8x16xbf16>
    %c0_8 = arith.constant 0 : index
    %c0_9 = arith.constant 0 : index
    %c0_10 = arith.constant 0 : index
    %c0_11 = arith.constant 0 : index
    %7 = vector.load %arg5[%c0_8, %c0_9, %c0_10, %c0_11] : memref<1x4x8x16xbf16, #tpu.memory_space<vmem>>, vector<1x4x8x16xbf16>
    %8 = vector.shape_cast %7 : vector<1x4x8x16xbf16> to vector<4x8x16xbf16>
    "tpu.trace_start"() <{level = 10 : i32, message = "hqd,hkd->hqk"}> : () -> ()
    %cst = arith.constant dense<0.000000e+00> : vector<4x8x8xf32>
    %9 = tpu.matmul %4, %6, %cst {dimension_numbers = #tpu.dot_dimension_numbers<[2], [2], [1], [1], [0, 0, 0, 1, 1, 1], [0], [0]>} : vector<4x8x16xbf16>, vector<4x8x16xbf16>, vector<4x8x8xf32> -> vector<4x8x8xf32>
    "tpu.trace_stop"() : () -> ()
    %c0_12 = arith.constant 0 : index
    %c0_13 = arith.constant 0 : index
    %c0_14 = arith.constant 0 : index
    %10 = vector.load %arg9[%c0_12, %c0_13, %c0_14] : memref<4x8x1xf32, #tpu.memory_space<vmem>>, vector<4x8x1xf32>
    %cst_15 = arith.constant dense<0xFF800000> : vector<4x8xf32>
    %11 = vector.multi_reduction <maximumf>, %9, %cst_15 [2] : vector<4x8x8xf32> to vector<4x8xf32>
    %12 = vector.shape_cast %11 : vector<4x8xf32> to vector<4x8x1xf32>
    %13 = arith.maximumf %10, %12 : vector<4x8x1xf32>
    %14 = arith.subf %10, %13 : vector<4x8x1xf32>
    %15 = math.exp %14 : vector<4x8x1xf32>
    %16 = vector.broadcast %13 : vector<4x8x1xf32> to vector<4x8x8xf32>
    %17 = arith.subf %9, %16 : vector<4x8x8xf32>
    %18 = math.exp %17 : vector<4x8x8xf32>
    %c0_16 = arith.constant 0 : index
    %c0_17 = arith.constant 0 : index
    %c0_18 = arith.constant 0 : index
    %19 = vector.load %arg10[%c0_16, %c0_17, %c0_18] : memref<4x8x1xf32, #tpu.memory_space<vmem>>, vector<4x8x1xf32>
    %20 = arith.mulf %15, %19 : vector<4x8x1xf32>
    %cst_19 = arith.constant dense<0.000000e+00> : vector<4x8xf32>
    %21 = vector.multi_reduction <add>, %18, %cst_19 [2] : vector<4x8x8xf32> to vector<4x8xf32>
    %22 = vector.shape_cast %21 : vector<4x8xf32> to vector<4x8x1xf32>
    %23 = arith.addf %20, %22 : vector<4x8x1xf32>
    %c0_20 = arith.constant 0 : index
    %c0_21 = arith.constant 0 : index
    %c0_22 = arith.constant 0 : index
    %24 = vector.load %arg10[%c0_20, %c0_21, %c0_22] : memref<4x8x1xf32, #tpu.memory_space<vmem>>, vector<4x8x1xf32>
    tpu.vector_store %arg10[%c0_20, %c0_21, %c0_22], %23 {strides = array<i32>} : memref<4x8x1xf32, #tpu.memory_space<vmem>>, vector<4x8x1xf32>,
    %25 = arith.truncf %18 : vector<4x8x8xf32> to vector<4x8x8xbf16>
    "tpu.trace_start"() <{level = 10 : i32, message = "hqk,hkd->hqd"}> : () -> ()
    %cst_23 = arith.constant dense<0.000000e+00> : vector<4x8x16xf32>
    %26 = tpu.matmul %25, %8, %cst_23 {dimension_numbers = #tpu.dot_dimension_numbers<[2], [1], [1], [2], [0, 0, 0, 1, 1, 2], [0], [0]>} : vector<4x8x8xbf16>, vector<4x8x16xbf16>, vector<4x8x16xf32> -> vector<4x8x16xf32>
    "tpu.trace_stop"() : () -> ()
    %c0_24 = arith.constant 0 : index
    %c0_25 = arith.constant 0 : index
    %c0_26 = arith.constant 0 : index
    %27 = vector.load %arg11[%c0_24, %c0_25, %c0_26] : memref<4x8x16xf32, #tpu.memory_space<vmem>>, vector<4x8x16xf32>
    %28 = vector.broadcast %15 : vector<4x8x1xf32> to vector<4x8x16xf32>
    %29 = arith.mulf %28, %27 : vector<4x8x16xf32>
    %30 = arith.addf %29, %26 : vector<4x8x16xf32>
    %c0_27 = arith.constant 0 : index
    %c0_28 = arith.constant 0 : index
    %c0_29 = arith.constant 0 : index
    %31 = vector.load %arg11[%c0_27, %c0_28, %c0_29] : memref<4x8x16xf32, #tpu.memory_space<vmem>>, vector<4x8x16xf32>
    tpu.vector_store %arg11[%c0_27, %c0_28, %c0_29], %30 {strides = array<i32>} : memref<4x8x16xf32, #tpu.memory_space<vmem>>, vector<4x8x16xf32>,
    %c0_30 = arith.constant 0 : index
    %c0_31 = arith.constant 0 : index
    %c0_32 = arith.constant 0 : index
    %32 = vector.load %arg9[%c0_30, %c0_31, %c0_32] : memref<4x8x1xf32, #tpu.memory_space<vmem>>, vector<4x8x1xf32>
    tpu.vector_store %arg9[%c0_30, %c0_31, %c0_32], %13 {strides = array<i32>} : memref<4x8x1xf32, #tpu.memory_space<vmem>>, vector<4x8x1xf32>,
    %c0_i32_33 = arith.constant 0 : i32
    %33 = arith.cmpi eq, %arg2, %c0_i32_33 : i32
    %34 = arith.extui %33 : i1 to i32
    %c0_i32_34 = arith.constant 0 : i32
    %35 = arith.cmpi ne, %34, %c0_i32_34 : i32
    scf.if %35 {
      %c0_35 = arith.constant 0 : index
      %c0_36 = arith.constant 0 : index
      %c0_37 = arith.constant 0 : index
      %36 = vector.load %arg10[%c0_35, %c0_36, %c0_37] : memref<4x8x1xf32, #tpu.memory_space<vmem>>, vector<4x8x1xf32>
      %37 = tpu.reciprocal %36 : vector<4x8x1xf32> -> vector<4x8x1xf32>
      %c0_38 = arith.constant 0 : index
      %c0_39 = arith.constant 0 : index
      %c0_40 = arith.constant 0 : index
      %38 = vector.load %arg11[%c0_38, %c0_39, %c0_40] : memref<4x8x16xf32, #tpu.memory_space<vmem>>, vector<4x8x16xf32>
      %39 = vector.broadcast %37 : vector<4x8x1xf32> to vector<4x8x16xf32>
      %40 = arith.mulf %38, %39 : vector<4x8x16xf32>
      %41 = arith.truncf %40 : vector<4x8x16xf32> to vector<4x8x16xbf16>
      %42 = vector.extract_strided_slice %41 {offsets = [0, 0, 0], sizes = [1, 8, 16], strides = [1, 1, 1]} : vector<4x8x16xbf16> to vector<1x8x16xbf16>
      %43 = vector.shape_cast %42 : vector<1x8x16xbf16> to vector<8x16xbf16>
      %c0_41 = arith.constant 0 : index
      %c0_42 = arith.constant 0 : index
      %c0_43 = arith.constant 0 : index
      %44 = vector.load %arg6[%c0_41, %c0_42, %c0_43] : memref<4x16x32xbf16, #tpu.memory_space<vmem>>, vector<1x16x32xbf16>
      %45 = vector.shape_cast %44 : vector<1x16x32xbf16> to vector<16x32xbf16>
      %cst_44 = arith.constant dense<0.000000e+00> : vector<8x32xf32>
      %46 = tpu.matmul %43, %45, %cst_44 {dimension_numbers = #tpu.dot_dimension_numbers<[1], [0], [0], [1], [0, 0, 1, 1], [], []>} : vector<8x16xbf16>, vector<16x32xbf16>, vector<8x32xf32> -> vector<8x32xf32>
      %47 = vector.extract_strided_slice %41 {offsets = [1, 0, 0], sizes = [1, 8, 16], strides = [1, 1, 1]} : vector<4x8x16xbf16> to vector<1x8x16xbf16>
      %48 = vector.shape_cast %47 : vector<1x8x16xbf16> to vector<8x16xbf16>
      %c1 = arith.constant 1 : index
      %c0_45 = arith.constant 0 : index
      %c0_46 = arith.constant 0 : index
      %49 = vector.load %arg6[%c1, %c0_45, %c0_46] : memref<4x16x32xbf16, #tpu.memory_space<vmem>>, vector<1x16x32xbf16>
      %50 = vector.shape_cast %49 : vector<1x16x32xbf16> to vector<16x32xbf16>
      %cst_47 = arith.constant dense<0.000000e+00> : vector<8x32xf32>
      %51 = tpu.matmul %48, %50, %cst_47 {dimension_numbers = #tpu.dot_dimension_numbers<[1], [0], [0], [1], [0, 0, 1, 1], [], []>} : vector<8x16xbf16>, vector<16x32xbf16>, vector<8x32xf32> -> vector<8x32xf32>
      %52 = arith.addf %46, %51 : vector<8x32xf32>
      %53 = vector.extract_strided_slice %41 {offsets = [2, 0, 0], sizes = [1, 8, 16], strides = [1, 1, 1]} : vector<4x8x16xbf16> to vector<1x8x16xbf16>
      %54 = vector.shape_cast %53 : vector<1x8x16xbf16> to vector<8x16xbf16>
      %c2 = arith.constant 2 : index
      %c0_48 = arith.constant 0 : index
      %c0_49 = arith.constant 0 : index
      %55 = vector.load %arg6[%c2, %c0_48, %c0_49] : memref<4x16x32xbf16, #tpu.memory_space<vmem>>, vector<1x16x32xbf16>
      %56 = vector.shape_cast %55 : vector<1x16x32xbf16> to vector<16x32xbf16>
      %cst_50 = arith.constant dense<0.000000e+00> : vector<8x32xf32>
      %57 = tpu.matmul %54, %56, %cst_50 {dimension_numbers = #tpu.dot_dimension_numbers<[1], [0], [0], [1], [0, 0, 1, 1], [], []>} : vector<8x16xbf16>, vector<16x32xbf16>, vector<8x32xf32> -> vector<8x32xf32>
      %58 = arith.addf %52, %57 : vector<8x32xf32>
      %59 = vector.extract_strided_slice %41 {offsets = [3, 0, 0], sizes = [1, 8, 16], strides = [1, 1, 1]} : vector<4x8x16xbf16> to vector<1x8x16xbf16>
      %60 = vector.shape_cast %59 : vector<1x8x16xbf16> to vector<8x16xbf16>
      %c3 = arith.constant 3 : index
      %c0_51 = arith.constant 0 : index
      %c0_52 = arith.constant 0 : index
      %61 = vector.load %arg6[%c3, %c0_51, %c0_52] : memref<4x16x32xbf16, #tpu.memory_space<vmem>>, vector<1x16x32xbf16>
      %62 = vector.shape_cast %61 : vector<1x16x32xbf16> to vector<16x32xbf16>
      %cst_53 = arith.constant dense<0.000000e+00> : vector<8x32xf32>
      %63 = tpu.matmul %60, %62, %cst_53 {dimension_numbers = #tpu.dot_dimension_numbers<[1], [0], [0], [1], [0, 0, 1, 1], [], []>} : vector<8x16xbf16>, vector<16x32xbf16>, vector<8x32xf32> -> vector<8x32xf32>
      %64 = arith.addf %58, %63 : vector<8x32xf32>
      %c0_54 = arith.constant 0 : index
      %c0_55 = arith.constant 0 : index
      %65 = vector.load %arg7[%c0_54, %c0_55] : memref<1x32xf32, #tpu.memory_space<vmem>>, vector<1x32xf32>
      %66 = vector.broadcast %65 : vector<1x32xf32> to vector<8x32xf32>
      %67 = arith.addf %64, %66 : vector<8x32xf32>
      %c0_56 = arith.constant 0 : index
      %c0_57 = arith.constant 0 : index
      %c0_58 = arith.constant 0 : index
      %68 = vector.load %arg8[%c0_56, %c0_57, %c0_58] : memref<1x8x32xf32, #tpu.memory_space<vmem>>, vector<1x8x32xf32>
      %69 = vector.shape_cast %68 : vector<1x8x32xf32> to vector<8x32xf32>
      %70 = vector.shape_cast %67 : vector<8x32xf32> to vector<1x8x32xf32>
      tpu.vector_store %arg8[%c0_56, %c0_57, %c0_58], %70 {strides = array<i32>} : memref<1x8x32xf32, #tpu.memory_space<vmem>>, vector<1x8x32xf32>,
    } else {
    }
    return
  }
  func.func @transform_0(%arg0: i32, %arg1: i32, %arg2: i32) -> (i32, i32, i32, i32) {
    %c0_i32 = arith.constant 0 : i32
    %c0_i32_0 = arith.constant 0 : i32
    %c0_i32_1 = arith.constant 0 : i32
    return %arg0, %c0_i32, %arg1, %c0_i32_0 : i32, i32, i32, i32
  }
  func.func @transform_1(%arg0: i32, %arg1: i32, %arg2: i32) -> (i32, i32, i32, i32) {
    %c1_i32 = arith.constant 1 : i32
    %c0_i32 = arith.constant 0 : i32
    %c0_i32_0 = arith.constant 0 : i32
    return %arg0, %c1_i32, %arg2, %c0_i32 : i32, i32, i32, i32
  }
  func.func @transform_2(%arg0: i32, %arg1: i32, %arg2: i32) -> (i32, i32, i32, i32) {
    %c2_i32 = arith.constant 2 : i32
    %c0_i32 = arith.constant 0 : i32
    %c0_i32_0 = arith.constant 0 : i32
    return %arg0, %c2_i32, %arg2, %c0_i32 : i32, i32, i32, i32
  }
  func.func @transform_3(%arg0: i32, %arg1: i32, %arg2: i32) -> (i32, i32, i32) {
    %c0_i32 = arith.constant 0 : i32
    %c0_i32_0 = arith.constant 0 : i32
    %c0_i32_1 = arith.constant 0 : i32
    %c0_i32_2 = arith.constant 0 : i32
    return %c0_i32, %c0_i32_0, %c0_i32_1 : i32, i32, i32
  }
  func.func @transform_4(%arg0: i32, %arg1: i32, %arg2: i32) -> (i32, i32) {
    %c0_i32 = arith.constant 0 : i32
    %c0_i32_0 = arith.constant 0 : i32
    %c0_i32_1 = arith.constant 0 : i32
    return %c0_i32, %c0_i32_0 : i32, i32
  }
  func.func @transform_5(%arg0: i32, %arg1: i32, %arg2: i32) -> (i32, i32, i32) {
    %c0_i32 = arith.constant 0 : i32
    %c0_i32_0 = arith.constant 0 : i32
    return %arg0, %arg1, %c0_i32 : i32, i32, i32
  }
}

</mosaic_0001>

<llo_original>
// kernel: _attention_forward.2
$region0: #{_attention_forward.2}
  #allocation0 [shape = 'u32[]', space=smem, size = 0x4, offset = 0x4, fixed_abs, tag = 'smem constant byte address 0x4 - core index']
  #allocation1 [shape = 'u32[144,128]{1,0:T(1,128)}', space=vmem, size = 0x12000, scoped, tag = 'internal scratch']
  #allocation2 [shape = 'f32[16,192]{1,0:T(8,128)}', space=vmem, size = 0x4000, scoped, tag = 'scratch operand']
  %s0 = inlined_call_operand.vmem [shape: bf16[16,32], index: 0, kind: input, shape index: {}]
  %s1 = inlined_call_operand.hbm [shape: bf16[32,192], index: 1, kind: input, shape index: {}]
  %s2 = inlined_call_operand.vmem [shape: bf16[16,192], index: 2, kind: output, shape index: {}]
  %s3 = sld [smem:[#allocation0]]
  $region30: #{_attention_forward.2} parent=0
    _
  %s5 = ssub.s32 1, %s3
  %s6 = scalar_select 0, %s5, %s3
  $region1: #{_attention_forward.2} parent=0
    #allocation3 [shape = 'u8[16384]{0}', space=vmem, size = 0x4000, scoped, tag = 'input window, operand 1, single buffered']
    #allocation4 [shape = 's32[1]{0}', space=sflag, size = 0x4, scoped, tag = 'scoped memory for _attention_forward.2']
    %7 = vsyncpa [#allocation4], 0
    // Predicated region
    $region2: #{_attention_forward.2} parent=1 // pred_check
      _
    $region3: #{_attention_forward.2} parent=1 // pred_check_branch
      %9 = sbr.rel (0) target = $region5
    $region4: #{_attention_forward.2} parent=1 // pred_region
      _
    $region5: #{_attention_forward.2} parent=1 // pred_fallthru
      _
    // Predicated region
    $region6: #{_attention_forward.2} parent=1 // pred_check
      _
    $region7: #{_attention_forward.2} parent=1 // pred_check_branch
      %11 = sbr.rel (0) target = $region9
    $region8: #{_attention_forward.2} parent=1 // pred_region
      %s13 = ssub.s32 512, 512
      %14 = vsyncadd [#allocation4], %s13
      %s15 = sshll.u32 [#allocation3], 4
      %s16 = int_to_ptr.vmem [resolvable:$true] %s15
      %21 = dma.hbm_to_vmem [thread:$0]  %s1, 512, %s16, [#allocation4], 128, 128, 8
    $region9: #{_attention_forward.2} parent=1 // pred_fallthru
      _
    // Predicated region
    $region10: #{_attention_forward.2} parent=1 // pred_check
      _
    $region11: #{_attention_forward.2} parent=1 // pred_check_branch
      %23 = sbr.rel (0) target = $region13
    $region12: #{_attention_forward.2} parent=1 // pred_region
      %24 = dma.done [#allocation4], 512
    $region13: #{_attention_forward.2} parent=1 // pred_fallthru
      _
    %p26 = scmp.eq.s32.totalorder 0, 0
    // Predicated region
    $region14: #{_attention_forward.2} parent=1 // pred_check
      %p27 = pneg %p26
    $region15: #{_attention_forward.2} parent=1 // pred_check_branch
      %29 = sbr.rel (%p27) target = $region17
    $region16: #{_attention_forward.2} parent=1 // pred_region
      %30 = vst [vmem:[#allocation2] sm:$0xff] 0.0
      %vm31 = vcmask 523264
      %32 = vst.msk [vmem:[#allocation2 + $0x8] sm:$0xff] %vm31, 0.0
      %33 = vst [vmem:[#allocation2 + $0x10] sm:$0xff] 0.0
      %34 = vst.msk [vmem:[#allocation2 + $0x18] sm:$0xff] %vm31, 0.0
    $region17: #{_attention_forward.2} parent=1 // pred_fallthru
      _
    %v35 = vld [vmem:[#allocation2] sm:$0xff]
    %v36 = vld [vmem:[#allocation2 + $0x8] sm:$0xff]
    %v37 = vld [vmem:[#allocation2 + $0x10] sm:$0xff]
    %v38 = vld [vmem:[#allocation2 + $0x18] sm:$0xff]
    %v39 = vld [vmem:[%s0] sm:$0xf]
    %v40 = vld [vmem:[%s0 + $0x4] sm:$0xf]
    %v41 = vld [vmem:[#allocation3] sm:$0xff]
    %v42 = vld [vmem:[#allocation3 + $0x8] sm:$0xff]
    %v43 = vld [vmem:[#allocation3 + $0x10] sm:$0xff]
    %v44 = vld [vmem:[#allocation3 + $0x18] sm:$0xff]
    %v47 = vunpack.c.l.b16 %v39
    %v48 = vunpack.c.l.b16 %v40
    %v49 = vpack.c.b16 %v48, %v47
    %v54 = vunpack.c.l.b16 %v41
    %v55 = vunpack.c.h.b16 %v41
    %v56 = vunpack.c.l.b16 %v42
    %v57 = vunpack.c.h.b16 %v42
    %v58 = vunpack.c.l.b16 %v43
    %v59 = vunpack.c.h.b16 %v43
    %v60 = vunpack.c.l.b16 %v44
    %v61 = vunpack.c.h.b16 %v44
    %v62 = vpack.c.b16 %v56, %v54
    %v63 = vpack.c.b16 %v57, %v55
    %v64 = vpack.c.b16 %v60, %v58
    %v65 = vpack.c.b16 %v61, %v59
    %vm70 = vcmask 261120
    %v72 = vsel %vm70, %v49, 0
    %74 = vmatprep.subr.bf16.mxu0 %v63
    %75 = vmatpush1.bf16.msra.mxu0 %v62
    %76 = vmatprep.subr.bf16.mxu0 %v65
    %77 = vmatpush1.bf16.msra.mxu0 %v64
    %78 = vmatprep.subr.bf16.mxu0 0
    %79 = vmatpush1.bf16.msra.mxu0 0
    %80 = vmatprep.subr.bf16.mxu0 0
    %81 = vmatpush1.bf16.msra.mxu0 0
    %82 = vmatprep.subr.bf16.mxu0 0
    %83 = vmatpush1.bf16.msra.mxu0 0
    %84 = vmatprep.subr.bf16.mxu0 0
    %85 = vmatpush1.bf16.msra.mxu0 0
    %86 = vmatprep.subr.bf16.mxu0 0
    %87 = vmatpush1.bf16.msra.mxu0 0
    %88 = vmatprep.subr.bf16.mxu0 0
    %89 = vmatpush1.bf16.msra.mxu0 0
    %90 = vmatprep.subr.bf16.mxu0 0
    %91 = vmatpush1.bf16.msra.mxu0 0
    %92 = vmatprep.subr.bf16.mxu0 0
    %93 = vmatpush1.bf16.msra.mxu0 0
    %94 = vmatprep.subr.bf16.mxu0 0
    %95 = vmatpush1.bf16.msra.mxu0 0
    %96 = vmatprep.subr.bf16.mxu0 0
    %97 = vmatpush1.bf16.msra.mxu0 0
    %98 = vmatprep.subr.bf16.mxu0 0
    %99 = vmatpush1.bf16.msra.mxu0 0
    %100 = vmatprep.subr.bf16.mxu0 0
    %101 = vmatpush1.bf16.msra.mxu0 0
    %102 = vmatprep.subr.bf16.mxu0 0
    %103 = vmatpush1.bf16.msra.mxu0 0
    %104 = vmatprep.subr.bf16.mxu0 0
    %105 = vmatpush1.bf16.msra.mxu0 0
    %106 = vmatprep.mubr.bf16.mxu0 0
    %107 = vmatmul.mubr.bf16.gmra.mrb[0].mxu0 %v72
    %v108 = vpop.f32.mrb[0].mxu0
    %v109 = vadd.f32 0.0, %v108
    %v110 = vpop.f32.mrb[0].mxu0
    %v111 = vadd.f32 0.0, %v110
    %v112 = vpop.f32.mrb[0].mxu0
    %v113 = vadd.f32 0.0, %v112
    %v114 = vpop.f32.mrb[0].mxu0
    %v115 = vadd.f32 0.0, %v114
    %116 = vdwg.mxu0
    %v117 = vadd.f32 %v35, %v109
    %v118 = vadd.f32 %v36, %v111
    %v119 = vadd.f32 %v37, %v113
    %v120 = vadd.f32 %v38, %v115
    %121 = vst [vmem:[#allocation2] sm:$0xff] %v117
    %vm122 = vcmask 523264
    %123 = vst.msk [vmem:[#allocation2 + $0x8] sm:$0xff] %vm122, %v118
    %124 = vst [vmem:[#allocation2 + $0x10] sm:$0xff] %v119
    %125 = vst.msk [vmem:[#allocation2 + $0x18] sm:$0xff] %vm122, %v120
    // Predicated region
    $region18: #{_attention_forward.2} parent=1 // pred_check
      %p126 = pneg %p26
    $region19: #{_attention_forward.2} parent=1 // pred_check_branch
      %128 = sbr.rel (%p126) target = $region21
    $region20: #{_attention_forward.2} parent=1 // pred_region
      %v129 = vld [vmem:[#allocation2] sm:$0xff]
      %v130 = vld [vmem:[#allocation2 + $0x8] sm:$0xff]
      %v131 = vld [vmem:[#allocation2 + $0x10] sm:$0xff]
      %v132 = vld [vmem:[#allocation2 + $0x18] sm:$0xff]
      %v133 = vpack.c.bf16 %v131, %v129
      %v134 = vpack.c.bf16 %v132, %v130
      %v137 = vunpack.c.l.b16 %v133
      %v138 = vunpack.c.l.b16 %v134
      %v139 = vunpack.c.h.b16 %v133
      %v140 = vunpack.c.h.b16 %v134
      %v141 = vpack.c.b16 %v138, %v137
      %v142 = vpack.c.b16 %v140, %v139
      %vm145 = vcmask 1043456
      %vm146 = vcmask 523268
      %vm147 = vmor %vm146, %vm145
      %148 = vst.msk [vmem:[%s2] sm:$0xff] %vm147, %v141
      %149 = vst.msk [vmem:[%s2 + $0x8] sm:$0xff] %vm147, %v142
    $region21: #{_attention_forward.2} parent=1 // pred_fallthru
      _
    // Predicated region
    $region22: #{_attention_forward.2} parent=1 // pred_check
      _
    $region23: #{_attention_forward.2} parent=1 // pred_check_branch
      %151 = sbr.rel (0) target = $region25
    $region24: #{_attention_forward.2} parent=1 // pred_region
      _
    $region25: #{_attention_forward.2} parent=1 // pred_fallthru
      _
    // Predicated region
    $region26: #{_attention_forward.2} parent=1 // pred_check
      _
    $region27: #{_attention_forward.2} parent=1 // pred_check_branch
      %153 = sbr.rel (0) target = $region29
    $region28: #{_attention_forward.2} parent=1 // pred_region
      _
    $region29: #{_attention_forward.2} parent=1 // pred_fallthru
      _
    %154 = vsyncpa [#allocation4], 1

// kernel: _attention_forward.3
$region0: #{_attention_forward.3}
  #allocation0 [shape = 'u32[]', space=smem, size = 0x4, offset = 0x4, fixed_abs, tag = 'smem constant byte address 0x4 - core index']
  #allocation1 [shape = 'u32[144,128]{1,0:T(1,128)}', space=vmem, size = 0x12000, scoped, tag = 'internal scratch']
  #allocation2 [shape = 'f32[4,8,1]{2,1,0:T(8,128)}', space=vmem, size = 0x4000, scoped, tag = 'scratch operand']
  #allocation3 [shape = 'f32[4,8,1]{2,1,0:T(8,128)}', space=vmem, size = 0x4000, scoped, tag = 'scratch operand']
  #allocation4 [shape = 'f32[4,8,16]{2,1,0:T(8,128)}', space=vmem, size = 0x4000, scoped, tag = 'scratch operand']
  %s0 = inlined_call_operand.vmem [shape: bf16[2,12,8,16], index: 0, kind: input, shape index: {}, may-alias: {0,1,2}]
  %s1 = inlined_call_operand.vmem [shape: bf16[2,12,8,16], index: 1, kind: input, shape index: {}, may-alias: {0,1,2}]
  %s2 = inlined_call_operand.vmem [shape: bf16[2,12,8,16], index: 2, kind: input, shape index: {}, may-alias: {0,1,2}]
  %s3 = inlined_call_operand.vmem [shape: bf16[4,16,32], index: 3, kind: input, shape index: {}]
  %s4 = inlined_call_operand.vmem [shape: f32[1,32], index: 4, kind: input, shape index: {}]
  %s5 = inlined_call_operand.hbm [shape: f32[2,8,32], index: 5, kind: output, shape index: {}]
  %s6 = sld [smem:[#allocation0]]
  $region61: #{_attention_forward.3} parent=0
    _
  %s8 = ssub.s32 1, %s6
  %s9 = scalar_select 0, %s8, %s6
  $region1: #{_attention_forward.3} parent=0
    #allocation5 [shape = 'u8[8192]{0}', space=vmem, size = 0x2000, scoped, tag = 'output window, operand 0']
    #allocation6 [shape = 's32[2]{0}', space=sflag, size = 0x8, scoped, tag = 'scoped memory for _attention_forward.3']
    %10 = vsyncpa [#allocation6], 0
    %s11 = scalar_lea.sflag [#allocation6], 1
    %12 = vsyncpa %s11, 0
    loop: start=0, step=1, limit=4
    $region2: #{_attention_forward.3} parent=1 // loop_pre_header
      _
    $region3: #{_attention_forward.3} parent=1 // loop_header
      %s14 = sphi 0, %s18
      %p15 = scmp.ge.s32.totalorder %s14, 4
      %s21 = sphi 0, %s40
      %s22 = sphi 0, %s36
      %s23 = sphi 0, %s32
      %s24 = sphi 0, %s21
      %s25 = sphi 0, %s22
      %s26 = sphi 0, %s23
      %s27 = sphi 0, %s24
      %s28 = sphi 0, %s25
      %s29 = sphi 0, %s26
      %s45 = sphi 0, %s47
      %s48 = sphi 0, %s45
      %s49 = sphi 0, %s48
      %s65 = sphi 0, %s49
      %s73 = sphi 0, %s75
      %s76 = sphi 0, %s73
      %s77 = sphi 0, %s76
      %s93 = sphi 0, %s77
      %s101 = sphi 0, %s103
      %s104 = sphi 0, %s101
      %s105 = sphi 0, %s104
      %s121 = sphi 0, %s105
      %s125 = sphi 0, %s125
      %s127 = sphi 0, %s125
      %s128 = sphi 0, %s127
      %s142 = sphi 0, %s128
      %s146 = sphi 0, %s146
      %s148 = sphi 0, %s146
      %s149 = sphi 0, %s148
      %s163 = sphi 0, %s149
      %s171 = sphi 0, %s173
      %s174 = sphi 0, %s171
      %s175 = sphi 0, %s174
      %s191 = sphi 0, %s175
    $region4: #{_attention_forward.3} parent=1 // loop_header_branch
      %17 = sbr.rel (%p15) target = $region8
    $region5: #{_attention_forward.3} parent=1 // loop_body
      %s19 = ssub.s32 %s14, 1
      %s20 = ssub.s32 %s14, 2
      %s30 = sadd.s32 1, %s23
      %p31 = scmp.ge.s32.totalorder %s30, 1
      %s32 = scalar_select %p31, 0, %s30
      %s33 = sadd.s32 1, %s22
      %s34 = scalar_select %p31, %s33, %s22
      %p35 = scmp.ge.s32.totalorder %s34, 1
      %s36 = scalar_select %p35, 0, %s34
      %s37 = sadd.s32 1, %s21
      %s38 = scalar_select %p35, %s37, %s21
      %p39 = scmp.ge.s32.totalorder %s38, 2
      %s40 = scalar_select %p39, 0, %s38
      %s41 = ssub.s32 %s21, %s40
      %s42 = ssub.s32 %s22, %s36
      %s43 = sor.u32 %s41, %s42
      %p44 = scmp.eq.s32.totalorder %s43, 0
      %s46 = sadd.s32 %s45, 1
      %s47 = scalar_select %p44, %s45, %s46
      %p50 = pneg %p44
      %p51 = scmp.eq.s32.totalorder %s14, 1
      %p52 = por %p50, %p51
      %p53 = scmp.ne.s32.totalorder %s45, %s48
      %p54 = scmp.eq.s32.totalorder %s14, 0
      %p55 = por %p53, %p54
      %p56 = scmp.ne.s32.totalorder %s45, %s48
      %p57 = scmp.eq.s32.totalorder %s19, 1
      %p58 = por %p56, %p57
      %p59 = scmp.ne.s32.totalorder %s48, %s49
      %p60 = scmp.eq.s32.totalorder %s19, 0
      %p61 = por %p59, %p60
      %p62 = scmp.ne.s32.totalorder %s48, %s49
      %p63 = scmp.eq.s32.totalorder %s20, 1
      %p64 = por %p62, %p63
      %p66 = scmp.ne.s32.totalorder %s49, %s65
      %p67 = scmp.eq.s32.totalorder %s20, 0
      %p68 = por %p66, %p67
      %s69 = ssub.s32 %s21, %s40
      %s70 = ssub.s32 %s23, %s32
      %s71 = sor.u32 %s69, %s70
      %p72 = scmp.eq.s32.totalorder %s71, 0
      %s74 = sadd.s32 %s73, 1
      %s75 = scalar_select %p72, %s73, %s74
      %p78 = pneg %p72
      %p79 = scmp.eq.s32.totalorder %s14, 1
      %p80 = por %p78, %p79
      %p81 = scmp.ne.s32.totalorder %s73, %s76
      %p82 = scmp.eq.s32.totalorder %s14, 0
      %p83 = por %p81, %p82
      %p84 = scmp.ne.s32.totalorder %s73, %s76
      %p85 = scmp.eq.s32.totalorder %s19, 1
      %p86 = por %p84, %p85
      %p87 = scmp.ne.s32.totalorder %s76, %s77
      %p88 = scmp.eq.s32.totalorder %s19, 0
      %p89 = por %p87, %p88
      %p90 = scmp.ne.s32.totalorder %s76, %s77
      %p91 = scmp.eq.s32.totalorder %s20, 1
      %p92 = por %p90, %p91
      %p94 = scmp.ne.s32.totalorder %s77, %s93
      %p95 = scmp.eq.s32.totalorder %s20, 0
      %p96 = por %p94, %p95
      %s97 = ssub.s32 %s21, %s40
      %s98 = ssub.s32 %s23, %s32
      %s99 = sor.u32 %s97, %s98
      %p100 = scmp.eq.s32.totalorder %s99, 0
      %s102 = sadd.s32 %s101, 1
      %s103 = scalar_select %p100, %s101, %s102
      %p106 = pneg %p100
      %p107 = scmp.eq.s32.totalorder %s14, 1
      %p108 = por %p106, %p107
      %p109 = scmp.ne.s32.totalorder %s101, %s104
      %p110 = scmp.eq.s32.totalorder %s14, 0
      %p111 = por %p109, %p110
      %p112 = scmp.ne.s32.totalorder %s101, %s104
      %p113 = scmp.eq.s32.totalorder %s19, 1
      %p114 = por %p112, %p113
      %p115 = scmp.ne.s32.totalorder %s104, %s105
      %p116 = scmp.eq.s32.totalorder %s19, 0
      %p117 = por %p115, %p116
      %p118 = scmp.ne.s32.totalorder %s104, %s105
      %p119 = scmp.eq.s32.totalorder %s20, 1
      %p120 = por %p118, %p119
      %p122 = scmp.ne.s32.totalorder %s105, %s121
      %p123 = scmp.eq.s32.totalorder %s20, 0
      %p124 = por %p122, %p123
      %s126 = sadd.s32 %s125, 1
      %p129 = scmp.eq.s32.totalorder %s14, 1
      %p130 = scmp.ne.s32.totalorder %s125, %s127
      %p131 = scmp.eq.s32.totalorder %s14, 0
      %p132 = por %p130, %p131
      %p133 = scmp.ne.s32.totalorder %s125, %s127
      %p134 = scmp.eq.s32.totalorder %s19, 1
      %p135 = por %p133, %p134
      %p136 = scmp.ne.s32.totalorder %s127, %s128
      %p137 = scmp.eq.s32.totalorder %s19, 0
      %p138 = por %p136, %p137
      %p139 = scmp.ne.s32.totalorder %s127, %s128
      %p140 = scmp.eq.s32.totalorder %s20, 1
      %p141 = por %p139, %p140
      %p143 = scmp.ne.s32.totalorder %s128, %s142
      %p144 = scmp.eq.s32.totalorder %s20, 0
      %p145 = por %p143, %p144
      %s147 = sadd.s32 %s146, 1
      %p150 = scmp.eq.s32.totalorder %s14, 1
      %p151 = scmp.ne.s32.totalorder %s146, %s148
      %p152 = scmp.eq.s32.totalorder %s14, 0
      %p153 = por %p151, %p152
      %p154 = scmp.ne.s32.totalorder %s146, %s148
      %p155 = scmp.eq.s32.totalorder %s19, 1
      %p156 = por %p154, %p155
      %p157 = scmp.ne.s32.totalorder %s148, %s149
      %p158 = scmp.eq.s32.totalorder %s19, 0
      %p159 = por %p157, %p158
      %p160 = scmp.ne.s32.totalorder %s148, %s149
      %p161 = scmp.eq.s32.totalorder %s20, 1
      %p162 = por %p160, %p161
      %p164 = scmp.ne.s32.totalorder %s149, %s163
      %p165 = scmp.eq.s32.totalorder %s20, 0
      %p166 = por %p164, %p165
      %s167 = ssub.s32 %s21, %s40
      %s168 = ssub.s32 %s22, %s36
      %s169 = sor.u32 %s167, %s168
      %p170 = scmp.eq.s32.totalorder %s169, 0
      %s172 = sadd.s32 %s171, 1
      %s173 = scalar_select %p170, %s171, %s172
      %p176 = pneg %p170
      %p177 = scmp.eq.s32.totalorder %s14, 1
      %p178 = por %p176, %p177
      %p179 = scmp.ne.s32.totalorder %s171, %s174
      %p180 = scmp.eq.s32.totalorder %s14, 0
      %p181 = por %p179, %p180
      %p182 = scmp.ne.s32.totalorder %s171, %s174
      %p183 = scmp.eq.s32.totalorder %s19, 1
      %p184 = por %p182, %p183
      %p185 = scmp.ne.s32.totalorder %s174, %s175
      %p186 = scmp.eq.s32.totalorder %s19, 0
      %p187 = por %p185, %p186
      %p188 = scmp.ne.s32.totalorder %s174, %s175
      %p189 = scmp.eq.s32.totalorder %s20, 1
      %p190 = por %p188, %p189
      %p192 = scmp.ne.s32.totalorder %s175, %s191
      %p193 = scmp.eq.s32.totalorder %s20, 0
      %p194 = por %p192, %p193
      %p195 = scmp.le.s32.totalorder 1, %s14
      %p196 = scmp.lt.s32.totalorder %s14, 3
      %p197 = pnand %p195, %p196
      %p198 = pneg %p197
      // Predicated region
      $region9: #{_attention_forward.3} parent=5 // pred_check
        _
      $region10: #{_attention_forward.3} parent=5 // pred_check_branch
        %200 = sbr.rel (%p197) target = $region12
      $region11: #{_attention_forward.3} parent=5 // pred_region
        %s201 = ssub.s32 %s14, 1
        // Predicated region
        $region13: #{_attention_forward.3} parent=11 // pred_check
          %p202 = pneg %p138
        $region14: #{_attention_forward.3} parent=11 // pred_check_branch
          %204 = sbr.rel (%p202) target = $region16
        $region15: #{_attention_forward.3} parent=11 // pred_region
          _
        $region16: #{_attention_forward.3} parent=11 // pred_fallthru
          _
        // Predicated region
        $region17: #{_attention_forward.3} parent=11 // pred_check
          %p205 = pneg %p159
        $region18: #{_attention_forward.3} parent=11 // pred_check_branch
          %207 = sbr.rel (%p205) target = $region20
        $region19: #{_attention_forward.3} parent=11 // pred_region
          _
        $region20: #{_attention_forward.3} parent=11 // pred_fallthru
          _
      $region12: #{_attention_forward.3} parent=5 // pred_fallthru
        _
      %p208 = scmp.lt.s32.totalorder %s14, 2
      // Predicated region
      $region21: #{_attention_forward.3} parent=5 // pred_check
        %p209 = pneg %p208
      $region22: #{_attention_forward.3} parent=5 // pred_check_branch
        %211 = sbr.rel (%p209) target = $region24
      $region23: #{_attention_forward.3} parent=5 // pred_region
        // Predicated region
        $region25: #{_attention_forward.3} parent=23 // pred_check
          %p212 = pneg %p55
        $region26: #{_attention_forward.3} parent=23 // pred_check_branch
          %214 = sbr.rel (%p212) target = $region28
        $region27: #{_attention_forward.3} parent=23 // pred_region
          %p215 = scmp.lt.s32.totalorder %s21, 1
          %s216 = scalar_select %p215, %s21, 1
          %p217 = scmp.lt.s32.totalorder %s22, 0
          %s218 = scalar_select %p217, %s22, 0
          %s219 = smul.addr %s216, 12
          %s220 = sadd.s32 %s218, %s219
          %s221 = smul.addr %s220, 4
          %s222 = scalar_lea.vmem %s0, %s221
        $region28: #{_attention_forward.3} parent=23 // pred_fallthru
          _
        // Predicated region
        $region29: #{_attention_forward.3} parent=23 // pred_check
          %p223 = pneg %p83
        $region30: #{_attention_forward.3} parent=23 // pred_check_branch
          %225 = sbr.rel (%p223) target = $region32
        $region31: #{_attention_forward.3} parent=23 // pred_region
          %p226 = scmp.lt.s32.totalorder %s21, 1
          %s227 = scalar_select %p226, %s21, 1
          %p228 = scmp.lt.s32.totalorder %s23, 0
          %s229 = scalar_select %p228, %s23, 0
          %s230 = sadd.s32 %s229, 4
          %s231 = smul.addr %s227, 12
          %s232 = sadd.s32 %s230, %s231
          %s233 = smul.addr %s232, 4
          %s234 = scalar_lea.vmem %s1, %s233
        $region32: #{_attention_forward.3} parent=23 // pred_fallthru
          _
        // Predicated region
        $region33: #{_attention_forward.3} parent=23 // pred_check
          %p235 = pneg %p111
        $region34: #{_attention_forward.3} parent=23 // pred_check_branch
          %237 = sbr.rel (%p235) target = $region36
        $region35: #{_attention_forward.3} parent=23 // pred_region
          %p238 = scmp.lt.s32.totalorder %s21, 1
          %s239 = scalar_select %p238, %s21, 1
          %p240 = scmp.lt.s32.totalorder %s23, 0
          %s241 = scalar_select %p240, %s23, 0
          %s242 = sadd.s32 %s241, 8
          %s243 = smul.addr %s239, 12
          %s244 = sadd.s32 %s242, %s243
          %s245 = smul.addr %s244, 4
          %s246 = scalar_lea.vmem %s2, %s245
        $region36: #{_attention_forward.3} parent=23 // pred_fallthru
          _
      $region24: #{_attention_forward.3} parent=5 // pred_fallthru
        _
      %p247 = scmp.le.s32.totalorder 1, %s14
      %p248 = scmp.lt.s32.totalorder %s14, 3
      %p249 = pnand %p247, %p248
      %p250 = pneg %p249
      // Predicated region
      $region37: #{_attention_forward.3} parent=5 // pred_check
        _
      $region38: #{_attention_forward.3} parent=5 // pred_check_branch
        %252 = sbr.rel (%p249) target = $region40
      $region39: #{_attention_forward.3} parent=5 // pred_region
        %s253 = ssub.s32 %s14, 1
        %p254 = scmp.lt.s32.totalorder %s24, 1
        %s255 = scalar_select %p254, %s24, 1
        %p256 = scmp.lt.s32.totalorder %s25, 0
        %s257 = scalar_select %p256, %s25, 0
        %s258 = smul.addr %s255, 12
        %s259 = sadd.s32 %s257, %s258
        %s260 = smul.addr %s259, 4
        %s261 = scalar_lea.vmem %s0, %s260
        %p262 = pneg %p61
        %p263 = pneg %p58
        %p264 = scmp.lt.s32.totalorder %s24, 1
        %s265 = scalar_select %p264, %s24, 1
        %p266 = scmp.lt.s32.totalorder %s26, 0
        %s267 = scalar_select %p266, %s26, 0
        %s268 = sadd.s32 %s267, 4
        %s269 = smul.addr %s265, 12
        %s270 = sadd.s32 %s268, %s269
        %s271 = smul.addr %s270, 4
        %s272 = scalar_lea.vmem %s1, %s271
        %p273 = pneg %p89
        %p274 = pneg %p86
        %p275 = scmp.lt.s32.totalorder %s24, 1
        %s276 = scalar_select %p275, %s24, 1
        %p277 = scmp.lt.s32.totalorder %s26, 0
        %s278 = scalar_select %p277, %s26, 0
        %s279 = sadd.s32 %s278, 8
        %s280 = smul.addr %s276, 12
        %s281 = sadd.s32 %s279, %s280
        %s282 = smul.addr %s281, 4
        %s283 = scalar_lea.vmem %s2, %s282
        %p284 = pneg %p117
        %p285 = pneg %p114
        %p286 = pneg %p138
        %p287 = pneg %p135
        %p288 = pneg %p159
        %p289 = pneg %p156
        %p290 = pneg %p187
        %p291 = pneg %p184
        %s292 = sand.u32 %s174, 1
        %s293 = scalar_lea.sflag [#allocation6], %s292
        %s294 = sand.u32 %s174, 1
        %s295 = smul.addr %s294, 8
        %s296 = scalar_lea.vmem [#allocation5], %s295
        %p297 = scmp.lt.s32.totalorder %s24, 1
        %s298 = scalar_select %p297, %s24, 1
        %p299 = scmp.lt.s32.totalorder %s25, 0
        %s300 = scalar_select %p299, %s25, 0
        %s301 = smul.addr %s298, 12
        %s302 = sadd.s32 %s300, %s301
        %s303 = smul.addr %s302, 4
        %s304 = scalar_lea.vmem %s0, %s303
        %p305 = scmp.lt.s32.totalorder %s24, 1
        %s306 = scalar_select %p305, %s24, 1
        %p307 = scmp.lt.s32.totalorder %s26, 0
        %s308 = scalar_select %p307, %s26, 0
        %s309 = sadd.s32 %s308, 4
        %s310 = smul.addr %s306, 12
        %s311 = sadd.s32 %s309, %s310
        %s312 = smul.addr %s311, 4
        %s313 = scalar_lea.vmem %s1, %s312
        %p314 = scmp.lt.s32.totalorder %s24, 1
        %s315 = scalar_select %p314, %s24, 1
        %p316 = scmp.lt.s32.totalorder %s26, 0
        %s317 = scalar_select %p316, %s26, 0
        %s318 = sadd.s32 %s317, 8
        %s319 = smul.addr %s315, 12
        %s320 = sadd.s32 %s318, %s319
        %s321 = smul.addr %s320, 4
        %s322 = scalar_lea.vmem %s2, %s321
        %p324 = scmp.eq.s32.totalorder %s26, 0
        // Predicated region
        $region41: #{_attention_forward.3} parent=39 // pred_check
          %p325 = pneg %p324
        $region42: #{_attention_forward.3} parent=39 // pred_check_branch
          %327 = sbr.rel (%p325) target = $region44
        $region43: #{_attention_forward.3} parent=39 // pred_region
          %vm328 = vcmask 7168
          %329 = vst.msk [vmem:[#allocation2] sm:$0xff] %vm328, -1e+30
          %330 = vst.msk [vmem:[#allocation2 + $0x8] sm:$0xff] %vm328, -1e+30
          %331 = vst.msk [vmem:[#allocation2 + $0x10] sm:$0xff] %vm328, -1e+30
          %332 = vst.msk [vmem:[#allocation2 + $0x18] sm:$0xff] %vm328, -1e+30
          %333 = vst.msk [vmem:[#allocation3] sm:$0xff] %vm328, 0.0
          %334 = vst.msk [vmem:[#allocation3 + $0x8] sm:$0xff] %vm328, 0.0
          %335 = vst.msk [vmem:[#allocation3 + $0x10] sm:$0xff] %vm328, 0.0
          %336 = vst.msk [vmem:[#allocation3 + $0x18] sm:$0xff] %vm328, 0.0
          %vm337 = vcmask 130048
          %338 = vst.msk [vmem:[#allocation4] sm:$0xff] %vm337, 0.0
          %339 = vst.msk [vmem:[#allocation4 + $0x8] sm:$0xff] %vm337, 0.0
          %340 = vst.msk [vmem:[#allocation4 + $0x10] sm:$0xff] %vm337, 0.0
          %341 = vst.msk [vmem:[#allocation4 + $0x18] sm:$0xff] %vm337, 0.0
        $region44: #{_attention_forward.3} parent=39 // pred_fallthru
          _
        %v342 = vld [vmem:[%s304] sm:$0xf]
        %v343 = vld [vmem:[%s304 + $0x4] sm:$0xf]
        %v344 = vld [vmem:[%s304 + $0x8] sm:$0xf]
        %v345 = vld [vmem:[%s304 + $0xc] sm:$0xf]
        %v346 = vld [vmem:[%s313] sm:$0xf]
        %v347 = vld [vmem:[%s313 + $0x4] sm:$0xf]
        %v348 = vld [vmem:[%s313 + $0x8] sm:$0xf]
        %v349 = vld [vmem:[%s313 + $0xc] sm:$0xf]
        %v350 = vld [vmem:[%s322] sm:$0xf]
        %v351 = vld [vmem:[%s322 + $0x4] sm:$0xf]
        %v352 = vld [vmem:[%s322 + $0x8] sm:$0xf]
        %v353 = vld [vmem:[%s322 + $0xc] sm:$0xf]
        %vm354 = vcmask 130048
        %v356 = vsel %vm354, %v342, 0
        %v359 = vsel %vm354, %v346, 0
        %361 = vmatprep.subr.bf16.mxu0 0
        %362 = vmatpush1.bf16.xpose.msra.mxu0 %v359
        %363 = vmatprep.subr.bf16.mxu0 0
        %364 = vmatpush1.bf16.xpose.msra.mxu0 0
        %365 = vmatprep.subr.bf16.mxu0 0
        %366 = vmatpush1.bf16.xpose.msra.mxu0 0
        %367 = vmatprep.subr.bf16.mxu0 0
        %368 = vmatpush1.bf16.xpose.msra.mxu0 0
        %369 = vmatprep.subr.bf16.mxu0 0
        %370 = vmatpush1.bf16.xpose.msra.mxu0 0
        %371 = vmatprep.subr.bf16.mxu0 0
        %372 = vmatpush1.bf16.xpose.msra.mxu0 0
        %373 = vmatprep.subr.bf16.mxu0 0
        %374 = vmatpush1.bf16.xpose.msra.mxu0 0
        %375 = vmatprep.subr.bf16.mxu0 0
        %376 = vmatpush1.bf16.xpose.msra.mxu0 0
        %377 = vmatprep.subr.bf16.mxu0 0
        %378 = vmatpush1.bf16.xpose.msra.mxu0 0
        %379 = vmatprep.subr.bf16.mxu0 0
        %380 = vmatpush1.bf16.xpose.msra.mxu0 0
        %381 = vmatprep.subr.bf16.mxu0 0
        %382 = vmatpush1.bf16.xpose.msra.mxu0 0
        %383 = vmatprep.subr.bf16.mxu0 0
        %384 = vmatpush1.bf16.xpose.msra.mxu0 0
        %385 = vmatprep.subr.bf16.mxu0 0
        %386 = vmatpush1.bf16.xpose.msra.mxu0 0
        %387 = vmatprep.subr.bf16.mxu0 0
        %388 = vmatpush1.bf16.xpose.msra.mxu0 0
        %389 = vmatprep.subr.bf16.mxu0 0
        %390 = vmatpush1.bf16.xpose.msra.mxu0 0
        %391 = vmatprep.subr.bf16.mxu0 0
        %392 = vmatpush1.bf16.xpose.msra.mxu0 0
        %393 = vmatprep.mubr.bf16.mxu0 0
        %394 = vmatmul.mubr.bf16.gmra.mrb[0].mxu0 %v356
        %v395 = vpop.f32.mrb[0].mxu0
        %v396 = vadd.f32 0.0, %v395
        %v397 = vpop.f32.mrb[0].mxu0
        %v398 = vpop.f32.mrb[0].mxu0
        %v399 = vpop.f32.mrb[0].mxu0
        %400 = vdwg.mxu0
        %v402 = vsel %vm354, %v343, 0
        %v405 = vsel %vm354, %v347, 0
        %407 = vmatprep.subr.bf16.mxu0 0
        %408 = vmatpush1.bf16.xpose.msra.mxu0 %v405
        %409 = vmatprep.subr.bf16.mxu0 0
        %410 = vmatpush1.bf16.xpose.msra.mxu0 0
        %411 = vmatprep.subr.bf16.mxu0 0
        %412 = vmatpush1.bf16.xpose.msra.mxu0 0
        %413 = vmatprep.subr.bf16.mxu0 0
        %414 = vmatpush1.bf16.xpose.msra.mxu0 0
        %415 = vmatprep.subr.bf16.mxu0 0
        %416 = vmatpush1.bf16.xpose.msra.mxu0 0
        %417 = vmatprep.subr.bf16.mxu0 0
        %418 = vmatpush1.bf16.xpose.msra.mxu0 0
        %419 = vmatprep.subr.bf16.mxu0 0
        %420 = vmatpush1.bf16.xpose.msra.mxu0 0
        %421 = vmatprep.subr.bf16.mxu0 0
        %422 = vmatpush1.bf16.xpose.msra.mxu0 0
        %423 = vmatprep.subr.bf16.mxu0 0
        %424 = vmatpush1.bf16.xpose.msra.mxu0 0
        %425 = vmatprep.subr.bf16.mxu0 0
        %426 = vmatpush1.bf16.xpose.msra.mxu0 0
        %427 = vmatprep.subr.bf16.mxu0 0
        %428 = vmatpush1.bf16.xpose.msra.mxu0 0
        %429 = vmatprep.subr.bf16.mxu0 0
        %430 = vmatpush1.bf16.xpose.msra.mxu0 0
        %431 = vmatprep.subr.bf16.mxu0 0
        %432 = vmatpush1.bf16.xpose.msra.mxu0 0
        %433 = vmatprep.subr.bf16.mxu0 0
        %434 = vmatpush1.bf16.xpose.msra.mxu0 0
        %435 = vmatprep.subr.bf16.mxu0 0
        %436 = vmatpush1.bf16.xpose.msra.mxu0 0
        %437 = vmatprep.subr.bf16.mxu0 0
        %438 = vmatpush1.bf16.xpose.msra.mxu0 0
        %439 = vmatprep.mubr.bf16.mxu0 0
        %440 = vmatmul.mubr.bf16.gmra.mrb[0].mxu0 %v402
        %v441 = vpop.f32.mrb[0].mxu0
        %v442 = vadd.f32 0.0, %v441
        %v443 = vpop.f32.mrb[0].mxu0
        %v444 = vpop.f32.mrb[0].mxu0
        %v445 = vpop.f32.mrb[0].mxu0
        %446 = vdwg.mxu0
        %v448 = vsel %vm354, %v344, 0
        %v451 = vsel %vm354, %v348, 0
        %453 = vmatprep.subr.bf16.mxu0 0
        %454 = vmatpush1.bf16.xpose.msra.mxu0 %v451
        %455 = vmatprep.subr.bf16.mxu0 0
        %456 = vmatpush1.bf16.xpose.msra.mxu0 0
        %457 = vmatprep.subr.bf16.mxu0 0
        %458 = vmatpush1.bf16.xpose.msra.mxu0 0
        %459 = vmatprep.subr.bf16.mxu0 0
        %460 = vmatpush1.bf16.xpose.msra.mxu0 0
        %461 = vmatprep.subr.bf16.mxu0 0
        %462 = vmatpush1.bf16.xpose.msra.mxu0 0
        %463 = vmatprep.subr.bf16.mxu0 0
        %464 = vmatpush1.bf16.xpose.msra.mxu0 0
        %465 = vmatprep.subr.bf16.mxu0 0
        %466 = vmatpush1.bf16.xpose.msra.mxu0 0
        %467 = vmatprep.subr.bf16.mxu0 0
        %468 = vmatpush1.bf16.xpose.msra.mxu0 0
        %469 = vmatprep.subr.bf16.mxu0 0
        %470 = vmatpush1.bf16.xpose.msra.mxu0 0
        %471 = vmatprep.subr.bf16.mxu0 0
        %472 = vmatpush1.bf16.xpose.msra.mxu0 0
        %473 = vmatprep.subr.bf16.mxu0 0
        %474 = vmatpush1.bf16.xpose.msra.mxu0 0
        %475 = vmatprep.subr.bf16.mxu0 0
        %476 = vmatpush1.bf16.xpose.msra.mxu0 0
        %477 = vmatprep.subr.bf16.mxu0 0
        %478 = vmatpush1.bf16.xpose.msra.mxu0 0
        %479 = vmatprep.subr.bf16.mxu0 0
        %480 = vmatpush1.bf16.xpose.msra.mxu0 0
        %481 = vmatprep.subr.bf16.mxu0 0
        %482 = vmatpush1.bf16.xpose.msra.mxu0 0
        %483 = vmatprep.subr.bf16.mxu0 0
        %484 = vmatpush1.bf16.xpose.msra.mxu0 0
        %485 = vmatprep.mubr.bf16.mxu0 0
        %486 = vmatmul.mubr.bf16.gmra.mrb[0].mxu0 %v448
        %v487 = vpop.f32.mrb[0].mxu0
        %v488 = vadd.f32 0.0, %v487
        %v489 = vpop.f32.mrb[0].mxu0
        %v490 = vpop.f32.mrb[0].mxu0
        %v491 = vpop.f32.mrb[0].mxu0
        %492 = vdwg.mxu0
        %v494 = vsel %vm354, %v345, 0
        %v497 = vsel %vm354, %v349, 0
        %499 = vmatprep.subr.bf16.mxu0 0
        %500 = vmatpush1.bf16.xpose.msra.mxu0 %v497
        %501 = vmatprep.subr.bf16.mxu0 0
        %502 = vmatpush1.bf16.xpose.msra.mxu0 0
        %503 = vmatprep.subr.bf16.mxu0 0
        %504 = vmatpush1.bf16.xpose.msra.mxu0 0
        %505 = vmatprep.subr.bf16.mxu0 0
        %506 = vmatpush1.bf16.xpose.msra.mxu0 0
        %507 = vmatprep.subr.bf16.mxu0 0
        %508 = vmatpush1.bf16.xpose.msra.mxu0 0
        %509 = vmatprep.subr.bf16.mxu0 0
        %510 = vmatpush1.bf16.xpose.msra.mxu0 0
        %511 = vmatprep.subr.bf16.mxu0 0
        %512 = vmatpush1.bf16.xpose.msra.mxu0 0
        %513 = vmatprep.subr.bf16.mxu0 0
        %514 = vmatpush1.bf16.xpose.msra.mxu0 0
        %515 = vmatprep.subr.bf16.mxu0 0
        %516 = vmatpush1.bf16.xpose.msra.mxu0 0
        %517 = vmatprep.subr.bf16.mxu0 0
        %518 = vmatpush1.bf16.xpose.msra.mxu0 0
        %519 = vmatprep.subr.bf16.mxu0 0
        %520 = vmatpush1.bf16.xpose.msra.mxu0 0
        %521 = vmatprep.subr.bf16.mxu0 0
        %522 = vmatpush1.bf16.xpose.msra.mxu0 0
        %523 = vmatprep.subr.bf16.mxu0 0
        %524 = vmatpush1.bf16.xpose.msra.mxu0 0
        %525 = vmatprep.subr.bf16.mxu0 0
        %526 = vmatpush1.bf16.xpose.msra.mxu0 0
        %527 = vmatprep.subr.bf16.mxu0 0
        %528 = vmatpush1.bf16.xpose.msra.mxu0 0
        %529 = vmatprep.subr.bf16.mxu0 0
        %530 = vmatpush1.bf16.xpose.msra.mxu0 0
        %531 = vmatprep.mubr.bf16.mxu0 0
        %532 = vmatmul.mubr.bf16.gmra.mrb[0].mxu0 %v494
        %v533 = vpop.f32.mrb[0].mxu0
        %v534 = vadd.f32 0.0, %v533
        %v535 = vpop.f32.mrb[0].mxu0
        %v536 = vpop.f32.mrb[0].mxu0
        %v537 = vpop.f32.mrb[0].mxu0
        %538 = vdwg.mxu0
        %v539 = vld [vmem:[#allocation2] sm:$0xff]
        %v540 = vld [vmem:[#allocation2 + $0x8] sm:$0xff]
        %v541 = vld [vmem:[#allocation2 + $0x10] sm:$0xff]
        %v542 = vld [vmem:[#allocation2 + $0x18] sm:$0xff]
        %vm543 = vcmask 64512
        %v544 = vsel %vm543, %v396, -inf
        %545 = vmax.xlane.f32.xlu0 %v544
        %v546 = vpop.xlane.xlu0 %545
        %v547 = vsel %vm543, %v442, -inf
        %548 = vmax.xlane.f32.xlu0 %v547
        %v549 = vpop.xlane.xlu0 %548
        %v550 = vsel %vm543, %v488, -inf
        %551 = vmax.xlane.f32.xlu0 %v550
        %v552 = vpop.xlane.xlu0 %551
        %v553 = vsel %vm543, %v534, -inf
        %554 = vmax.xlane.f32.xlu0 %v553
        %v555 = vpop.xlane.xlu0 %554
        %v556 = vmax.f32 %v539, %v546
        %v557 = vmax.f32 %v540, %v549
        %v558 = vmax.f32 %v541, %v552
        %v559 = vmax.f32 %v542, %v555
        %v560 = vsub.f32 %v539, %v556
        %v561 = vsub.f32 %v540, %v557
        %v562 = vsub.f32 %v541, %v558
        %v563 = vsub.f32 %v542, %v559
        %v564 = vmul.f32 %v560, 1.442695
        %v565 = vpow.pop %v564
        %v566 = vmul.f32 %v561, 1.442695
        %v567 = vpow.pop %v566
        %v568 = vmul.f32 %v562, 1.442695
        %v569 = vpow.pop %v568
        %v570 = vmul.f32 %v563, 1.442695
        %v571 = vpow.pop %v570
        %573 = vset.pattern.permute.xlu0 0
        %574 = vperm.xlu0 %573, %v556
        %v575 = vpop.permute.xlu0 %574
        %578 = vset.pattern.permute.xlu0 0
        %579 = vperm.xlu0 %578, %v557
        %v580 = vpop.permute.xlu0 %579
        %583 = vset.pattern.permute.xlu0 0
        %584 = vperm.xlu0 %583, %v558
        %v585 = vpop.permute.xlu0 %584
        %588 = vset.pattern.permute.xlu0 0
        %589 = vperm.xlu0 %588, %v559
        %v590 = vpop.permute.xlu0 %589
        %v592 = vsub.f32 %v396, %v575
        %v593 = vsub.f32 %v442, %v580
        %v594 = vsub.f32 %v488, %v585
        %v595 = vsub.f32 %v534, %v590
        %v596 = vmul.f32 %v592, 1.442695
        %v597 = vpow.pop %v596
        %v598 = vmul.f32 %v593, 1.442695
        %v599 = vpow.pop %v598
        %v600 = vmul.f32 %v594, 1.442695
        %v601 = vpow.pop %v600
        %v602 = vmul.f32 %v595, 1.442695
        %v603 = vpow.pop %v602
        %v604 = vld [vmem:[#allocation3] sm:$0xff]
        %v605 = vld [vmem:[#allocation3 + $0x8] sm:$0xff]
        %v606 = vld [vmem:[#allocation3 + $0x10] sm:$0xff]
        %v607 = vld [vmem:[#allocation3 + $0x18] sm:$0xff]
        %v608 = vmul.f32 %v565, %v604
        %v609 = vmul.f32 %v567, %v605
        %v610 = vmul.f32 %v569, %v606
        %v611 = vmul.f32 %v571, %v607
        %v612 = vsel %vm543, %v597, 0.0
        %613 = vadd.xlane.f32.xlu0 %v612
        %v614 = vpop.xlane.xlu0 %613
        %v615 = vsel %vm543, %v599, 0.0
        %616 = vadd.xlane.f32.xlu0 %v615
        %v617 = vpop.xlane.xlu0 %616
        %v618 = vsel %vm543, %v601, 0.0
        %619 = vadd.xlane.f32.xlu0 %v618
        %v620 = vpop.xlane.xlu0 %619
        %v621 = vsel %vm543, %v603, 0.0
        %622 = vadd.xlane.f32.xlu0 %v621
        %v623 = vpop.xlane.xlu0 %622
        %v624 = vadd.f32 %v608, %v614
        %v625 = vadd.f32 %v609, %v617
        %v626 = vadd.f32 %v610, %v620
        %v627 = vadd.f32 %v611, %v623
        %vm628 = vcmask 7168
        %629 = vst.msk [vmem:[#allocation3] sm:$0xff] %vm628, %v624
        %630 = vst.msk [vmem:[#allocation3 + $0x8] sm:$0xff] %vm628, %v625
        %631 = vst.msk [vmem:[#allocation3 + $0x10] sm:$0xff] %vm628, %v626
        %632 = vst.msk [vmem:[#allocation3 + $0x18] sm:$0xff] %vm628, %v627
        %v633 = vpack.c.bf16 %v597, %v597
        %v634 = vpack.c.bf16 %v599, %v599
        %v635 = vpack.c.bf16 %v601, %v601
        %v636 = vpack.c.bf16 %v603, %v603
        %v638 = vsel %vm543, %v633, 0
        %vm640 = vcmask 1043456
        %v642 = vsel %vm640, %v350, 0
        %644 = vmatprep.subr.bf16.mxu0 0
        %645 = vmatpush1.bf16.msra.mxu0 %v642
        %646 = vmatprep.subr.bf16.mxu0 0
        %647 = vmatpush1.bf16.msra.mxu0 0
        %648 = vmatprep.subr.bf16.mxu0 0
        %649 = vmatpush1.bf16.msra.mxu0 0
        %650 = vmatprep.subr.bf16.mxu0 0
        %651 = vmatpush1.bf16.msra.mxu0 0
        %652 = vmatprep.subr.bf16.mxu0 0
        %653 = vmatpush1.bf16.msra.mxu0 0
        %654 = vmatprep.subr.bf16.mxu0 0
        %655 = vmatpush1.bf16.msra.mxu0 0
        %656 = vmatprep.subr.bf16.mxu0 0
        %657 = vmatpush1.bf16.msra.mxu0 0
        %658 = vmatprep.subr.bf16.mxu0 0
        %659 = vmatpush1.bf16.msra.mxu0 0
        %660 = vmatprep.subr.bf16.mxu0 0
        %661 = vmatpush1.bf16.msra.mxu0 0
        %662 = vmatprep.subr.bf16.mxu0 0
        %663 = vmatpush1.bf16.msra.mxu0 0
        %664 = vmatprep.subr.bf16.mxu0 0
        %665 = vmatpush1.bf16.msra.mxu0 0
        %666 = vmatprep.subr.bf16.mxu0 0
        %667 = vmatpush1.bf16.msra.mxu0 0
        %668 = vmatprep.subr.bf16.mxu0 0
        %669 = vmatpush1.bf16.msra.mxu0 0
        %670 = vmatprep.subr.bf16.mxu0 0
        %671 = vmatpush1.bf16.msra.mxu0 0
        %672 = vmatprep.subr.bf16.mxu0 0
        %673 = vmatpush1.bf16.msra.mxu0 0
        %674 = vmatprep.subr.bf16.mxu0 0
        %675 = vmatpush1.bf16.msra.mxu0 0
        %676 = vmatprep.mubr.bf16.mxu0 0
        %677 = vmatmul.mubr.bf16.gmra.mrb[0].mxu0 %v638
        %v678 = vpop.f32.mrb[0].mxu0
        %v679 = vadd.f32 0.0, %v678
        %v680 = vpop.f32.mrb[0].mxu0
        %v681 = vpop.f32.mrb[0].mxu0
        %v682 = vpop.f32.mrb[0].mxu0
        %683 = vdwg.mxu0
        %v685 = vsel %vm543, %v634, 0
        %v688 = vsel %vm640, %v351, 0
        %690 = vmatprep.subr.bf16.mxu0 0
        %691 = vmatpush1.bf16.msra.mxu0 %v688
        %692 = vmatprep.subr.bf16.mxu0 0
        %693 = vmatpush1.bf16.msra.mxu0 0
        %694 = vmatprep.subr.bf16.mxu0 0
        %695 = vmatpush1.bf16.msra.mxu0 0
        %696 = vmatprep.subr.bf16.mxu0 0
        %697 = vmatpush1.bf16.msra.mxu0 0
        %698 = vmatprep.subr.bf16.mxu0 0
        %699 = vmatpush1.bf16.msra.mxu0 0
        %700 = vmatprep.subr.bf16.mxu0 0
        %701 = vmatpush1.bf16.msra.mxu0 0
        %702 = vmatprep.subr.bf16.mxu0 0
        %703 = vmatpush1.bf16.msra.mxu0 0
        %704 = vmatprep.subr.bf16.mxu0 0
        %705 = vmatpush1.bf16.msra.mxu0 0
        %706 = vmatprep.subr.bf16.mxu0 0
        %707 = vmatpush1.bf16.msra.mxu0 0
        %708 = vmatprep.subr.bf16.mxu0 0
        %709 = vmatpush1.bf16.msra.mxu0 0
        %710 = vmatprep.subr.bf16.mxu0 0
        %711 = vmatpush1.bf16.msra.mxu0 0
        %712 = vmatprep.subr.bf16.mxu0 0
        %713 = vmatpush1.bf16.msra.mxu0 0
        %714 = vmatprep.subr.bf16.mxu0 0
        %715 = vmatpush1.bf16.msra.mxu0 0
        %716 = vmatprep.subr.bf16.mxu0 0
        %717 = vmatpush1.bf16.msra.mxu0 0
        %718 = vmatprep.subr.bf16.mxu0 0
        %719 = vmatpush1.bf16.msra.mxu0 0
        %720 = vmatprep.subr.bf16.mxu0 0
        %721 = vmatpush1.bf16.msra.mxu0 0
        %722 = vmatprep.mubr.bf16.mxu0 0
        %723 = vmatmul.mubr.bf16.gmra.mrb[0].mxu0 %v685
        %v724 = vpop.f32.mrb[0].mxu0
        %v725 = vadd.f32 0.0, %v724
        %v726 = vpop.f32.mrb[0].mxu0
        %v727 = vpop.f32.mrb[0].mxu0
        %v728 = vpop.f32.mrb[0].mxu0
        %729 = vdwg.mxu0
        %v731 = vsel %vm543, %v635, 0
        %v734 = vsel %vm640, %v352, 0
        %736 = vmatprep.subr.bf16.mxu0 0
        %737 = vmatpush1.bf16.msra.mxu0 %v734
        %738 = vmatprep.subr.bf16.mxu0 0
        %739 = vmatpush1.bf16.msra.mxu0 0
        %740 = vmatprep.subr.bf16.mxu0 0
        %741 = vmatpush1.bf16.msra.mxu0 0
        %742 = vmatprep.subr.bf16.mxu0 0
        %743 = vmatpush1.bf16.msra.mxu0 0
        %744 = vmatprep.subr.bf16.mxu0 0
        %745 = vmatpush1.bf16.msra.mxu0 0
        %746 = vmatprep.subr.bf16.mxu0 0
        %747 = vmatpush1.bf16.msra.mxu0 0
        %748 = vmatprep.subr.bf16.mxu0 0
        %749 = vmatpush1.bf16.msra.mxu0 0
        %750 = vmatprep.subr.bf16.mxu0 0
        %751 = vmatpush1.bf16.msra.mxu0 0
        %752 = vmatprep.subr.bf16.mxu0 0
        %753 = vmatpush1.bf16.msra.mxu0 0
        %754 = vmatprep.subr.bf16.mxu0 0
        %755 = vmatpush1.bf16.msra.mxu0 0
        %756 = vmatprep.subr.bf16.mxu0 0
        %757 = vmatpush1.bf16.msra.mxu0 0
        %758 = vmatprep.subr.bf16.mxu0 0
        %759 = vmatpush1.bf16.msra.mxu0 0
        %760 = vmatprep.subr.bf16.mxu0 0
        %761 = vmatpush1.bf16.msra.mxu0 0
        %762 = vmatprep.subr.bf16.mxu0 0
        %763 = vmatpush1.bf16.msra.mxu0 0
        %764 = vmatprep.subr.bf16.mxu0 0
        %765 = vmatpush1.bf16.msra.mxu0 0
        %766 = vmatprep.subr.bf16.mxu0 0
        %767 = vmatpush1.bf16.msra.mxu0 0
        %768 = vmatprep.mubr.bf16.mxu0 0
        %769 = vmatmul.mubr.bf16.gmra.mrb[0].mxu0 %v731
        %v770 = vpop.f32.mrb[0].mxu0
        %v771 = vadd.f32 0.0, %v770
        %v772 = vpop.f32.mrb[0].mxu0
        %v773 = vpop.f32.mrb[0].mxu0
        %v774 = vpop.f32.mrb[0].mxu0
        %775 = vdwg.mxu0
        %v777 = vsel %vm543, %v636, 0
        %v780 = vsel %vm640, %v353, 0
        %782 = vmatprep.subr.bf16.mxu0 0
        %783 = vmatpush1.bf16.msra.mxu0 %v780
        %784 = vmatprep.subr.bf16.mxu0 0
        %785 = vmatpush1.bf16.msra.mxu0 0
        %786 = vmatprep.subr.bf16.mxu0 0
        %787 = vmatpush1.bf16.msra.mxu0 0
        %788 = vmatprep.subr.bf16.mxu0 0
        %789 = vmatpush1.bf16.msra.mxu0 0
        %790 = vmatprep.subr.bf16.mxu0 0
        %791 = vmatpush1.bf16.msra.mxu0 0
        %792 = vmatprep.subr.bf16.mxu0 0
        %793 = vmatpush1.bf16.msra.mxu0 0
        %794 = vmatprep.subr.bf16.mxu0 0
        %795 = vmatpush1.bf16.msra.mxu0 0
        %796 = vmatprep.subr.bf16.mxu0 0
        %797 = vmatpush1.bf16.msra.mxu0 0
        %798 = vmatprep.subr.bf16.mxu0 0
        %799 = vmatpush1.bf16.msra.mxu0 0
        %800 = vmatprep.subr.bf16.mxu0 0
        %801 = vmatpush1.bf16.msra.mxu0 0
        %802 = vmatprep.subr.bf16.mxu0 0
        %803 = vmatpush1.bf16.msra.mxu0 0
        %804 = vmatprep.subr.bf16.mxu0 0
        %805 = vmatpush1.bf16.msra.mxu0 0
        %806 = vmatprep.subr.bf16.mxu0 0
        %807 = vmatpush1.bf16.msra.mxu0 0
        %808 = vmatprep.subr.bf16.mxu0 0
        %809 = vmatpush1.bf16.msra.mxu0 0
        %810 = vmatprep.subr.bf16.mxu0 0
        %811 = vmatpush1.bf16.msra.mxu0 0
        %812 = vmatprep.subr.bf16.mxu0 0
        %813 = vmatpush1.bf16.msra.mxu0 0
        %814 = vmatprep.mubr.bf16.mxu0 0
        %815 = vmatmul.mubr.bf16.gmra.mrb[0].mxu0 %v777
        %v816 = vpop.f32.mrb[0].mxu0
        %v817 = vadd.f32 0.0, %v816
        %v818 = vpop.f32.mrb[0].mxu0
        %v819 = vpop.f32.mrb[0].mxu0
        %v820 = vpop.f32.mrb[0].mxu0
        %821 = vdwg.mxu0
        %v822 = vld [vmem:[#allocation4] sm:$0xff]
        %v823 = vld [vmem:[#allocation4 + $0x8] sm:$0xff]
        %v824 = vld [vmem:[#allocation4 + $0x10] sm:$0xff]
        %v825 = vld [vmem:[#allocation4 + $0x18] sm:$0xff]
        %827 = vset.pattern.permute.xlu0 0
        %828 = vperm.xlu0 %827, %v565
        %v829 = vpop.permute.xlu0 %828
        %832 = vset.pattern.permute.xlu0 0
        %833 = vperm.xlu0 %832, %v567
        %v834 = vpop.permute.xlu0 %833
        %837 = vset.pattern.permute.xlu0 0
        %838 = vperm.xlu0 %837, %v569
        %v839 = vpop.permute.xlu0 %838
        %842 = vset.pattern.permute.xlu0 0
        %843 = vperm.xlu0 %842, %v571
        %v844 = vpop.permute.xlu0 %843
        %v846 = vmul.f32 %v829, %v822
        %v847 = vmul.f32 %v834, %v823
        %v848 = vmul.f32 %v839, %v824
        %v849 = vmul.f32 %v844, %v825
        %v850 = vadd.f32 %v846, %v679
        %v851 = vadd.f32 %v847, %v725
        %v852 = vadd.f32 %v848, %v771
        %v853 = vadd.f32 %v849, %v817
        %854 = vst.msk [vmem:[#allocation4] sm:$0xff] %vm354, %v850
        %855 = vst.msk [vmem:[#allocation4 + $0x8] sm:$0xff] %vm354, %v851
        %856 = vst.msk [vmem:[#allocation4 + $0x10] sm:$0xff] %vm354, %v852
        %857 = vst.msk [vmem:[#allocation4 + $0x18] sm:$0xff] %vm354, %v853
        %858 = vst.msk [vmem:[#allocation2] sm:$0xff] %vm628, %v556
        %859 = vst.msk [vmem:[#allocation2 + $0x8] sm:$0xff] %vm628, %v557
        %860 = vst.msk [vmem:[#allocation2 + $0x10] sm:$0xff] %vm628, %v558
        %861 = vst.msk [vmem:[#allocation2 + $0x18] sm:$0xff] %vm628, %v559
        // Predicated region
        $region45: #{_attention_forward.3} parent=39 // pred_check
          %p862 = pneg %p324
        $region46: #{_attention_forward.3} parent=39 // pred_check_branch
          %864 = sbr.rel (%p862) target = $region48
        $region47: #{_attention_forward.3} parent=39 // pred_region
          %v865 = vld [vmem:[#allocation3] sm:$0xff]
          %v866 = vld [vmem:[#allocation3 + $0x8] sm:$0xff]
          %v867 = vld [vmem:[#allocation3 + $0x10] sm:$0xff]
          %v868 = vld [vmem:[#allocation3 + $0x18] sm:$0xff]
          %v869 = vrcp.pop %v865
          %v870 = vrcp.pop %v866
          %v871 = vrcp.pop %v867
          %v872 = vrcp.pop %v868
          %v873 = vld [vmem:[#allocation4] sm:$0xff]
          %v874 = vld [vmem:[#allocation4 + $0x8] sm:$0xff]
          %v875 = vld [vmem:[#allocation4 + $0x10] sm:$0xff]
          %v876 = vld [vmem:[#allocation4 + $0x18] sm:$0xff]
          %878 = vset.pattern.permute.xlu0 0
          %879 = vperm.xlu0 %878, %v869
          %v880 = vpop.permute.xlu0 %879
          %883 = vset.pattern.permute.xlu0 0
          %884 = vperm.xlu0 %883, %v870
          %v885 = vpop.permute.xlu0 %884
          %888 = vset.pattern.permute.xlu0 0
          %889 = vperm.xlu0 %888, %v871
          %v890 = vpop.permute.xlu0 %889
          %893 = vset.pattern.permute.xlu0 0
          %894 = vperm.xlu0 %893, %v872
          %v895 = vpop.permute.xlu0 %894
          %v897 = vmul.f32 %v873, %v880
          %v898 = vmul.f32 %v874, %v885
          %v899 = vmul.f32 %v875, %v890
          %v900 = vmul.f32 %v876, %v895
          %v901 = vpack.c.bf16 %v897, %v897
          %v902 = vpack.c.bf16 %v898, %v898
          %v903 = vpack.c.bf16 %v899, %v899
          %v904 = vpack.c.bf16 %v900, %v900
          %v905 = vld [vmem:[%s3] sm:$0xf]
          %v906 = vld [vmem:[%s3 + $0x4] sm:$0xf]
          %s907 = scalar_lea.vmem %s3, 8
          %v908 = vld [vmem:[%s907] sm:$0xf]
          %v909 = vld [vmem:[%s907 + $0x4] sm:$0xf]
          %v912 = vunpack.c.l.b16 %v908
          %v913 = vunpack.c.l.b16 %v909
          %v914 = vpack.c.b16 %v913, %v912
          %v917 = vsel %vm354, %v902, 0
          %919 = vmatprep.subr.bf16.mxu0 0
          %920 = vmatpush1.bf16.msra.mxu0 %v914
          %921 = vmatprep.subr.bf16.mxu0 0
          %922 = vmatpush1.bf16.msra.mxu0 0
          %923 = vmatprep.subr.bf16.mxu0 0
          %924 = vmatpush1.bf16.msra.mxu0 0
          %925 = vmatprep.subr.bf16.mxu0 0
          %926 = vmatpush1.bf16.msra.mxu0 0
          %927 = vmatprep.subr.bf16.mxu0 0
          %928 = vmatpush1.bf16.msra.mxu0 0
          %929 = vmatprep.subr.bf16.mxu0 0
          %930 = vmatpush1.bf16.msra.mxu0 0
          %931 = vmatprep.subr.bf16.mxu0 0
          %932 = vmatpush1.bf16.msra.mxu0 0
          %933 = vmatprep.subr.bf16.mxu0 0
          %934 = vmatpush1.bf16.msra.mxu0 0
          %935 = vmatprep.subr.bf16.mxu0 0
          %936 = vmatpush1.bf16.msra.mxu0 0
          %937 = vmatprep.subr.bf16.mxu0 0
          %938 = vmatpush1.bf16.msra.mxu0 0
          %939 = vmatprep.subr.bf16.mxu0 0
          %940 = vmatpush1.bf16.msra.mxu0 0
          %941 = vmatprep.subr.bf16.mxu0 0
          %942 = vmatpush1.bf16.msra.mxu0 0
          %943 = vmatprep.subr.bf16.mxu0 0
          %944 = vmatpush1.bf16.msra.mxu0 0
          %945 = vmatprep.subr.bf16.mxu0 0
          %946 = vmatpush1.bf16.msra.mxu0 0
          %947 = vmatprep.subr.bf16.mxu0 0
          %948 = vmatpush1.bf16.msra.mxu0 0
          %949 = vmatprep.subr.bf16.mxu0 0
          %950 = vmatpush1.bf16.msra.mxu0 0
          %951 = vmatprep.mubr.bf16.mxu0 0
          %952 = vmatmul.mubr.bf16.gmra.mrb[0].mxu0 %v917
          %v953 = vpop.f32.mrb[0].mxu0
          %v954 = vadd.f32 0.0, %v953
          %v955 = vpop.f32.mrb[0].mxu0
          %v956 = vpop.f32.mrb[0].mxu0
          %v957 = vpop.f32.mrb[0].mxu0
          %958 = vdwg.mxu0
          %v961 = vunpack.c.l.b16 %v905
          %v962 = vunpack.c.l.b16 %v906
          %v963 = vpack.c.b16 %v962, %v961
          %v966 = vsel %vm354, %v901, 0
          %968 = vmatprep.subr.bf16.mxu0 0
          %969 = vmatpush1.bf16.msra.mxu0 %v963
          %970 = vmatprep.subr.bf16.mxu0 0
          %971 = vmatpush1.bf16.msra.mxu0 0
          %972 = vmatprep.subr.bf16.mxu0 0
          %973 = vmatpush1.bf16.msra.mxu0 0
          %974 = vmatprep.subr.bf16.mxu0 0
          %975 = vmatpush1.bf16.msra.mxu0 0
          %976 = vmatprep.subr.bf16.mxu0 0
          %977 = vmatpush1.bf16.msra.mxu0 0
          %978 = vmatprep.subr.bf16.mxu0 0
          %979 = vmatpush1.bf16.msra.mxu0 0
          %980 = vmatprep.subr.bf16.mxu0 0
          %981 = vmatpush1.bf16.msra.mxu0 0
          %982 = vmatprep.subr.bf16.mxu0 0
          %983 = vmatpush1.bf16.msra.mxu0 0
          %984 = vmatprep.subr.bf16.mxu0 0
          %985 = vmatpush1.bf16.msra.mxu0 0
          %986 = vmatprep.subr.bf16.mxu0 0
          %987 = vmatpush1.bf16.msra.mxu0 0
          %988 = vmatprep.subr.bf16.mxu0 0
          %989 = vmatpush1.bf16.msra.mxu0 0
          %990 = vmatprep.subr.bf16.mxu0 0
          %991 = vmatpush1.bf16.msra.mxu0 0
          %992 = vmatprep.subr.bf16.mxu0 0
          %993 = vmatpush1.bf16.msra.mxu0 0
          %994 = vmatprep.subr.bf16.mxu0 0
          %995 = vmatpush1.bf16.msra.mxu0 0
          %996 = vmatprep.subr.bf16.mxu0 0
          %997 = vmatpush1.bf16.msra.mxu0 0
          %998 = vmatprep.subr.bf16.mxu0 0
          %999 = vmatpush1.bf16.msra.mxu0 0
          %1000 = vmatprep.mubr.bf16.mxu0 0
          %1001 = vmatmul.mubr.bf16.gmra.mrb[0].mxu0 %v966
          %v1002 = vpop.f32.mrb[0].mxu0
          %v1003 = vadd.f32 %v954, %v1002
          %v1004 = vpop.f32.mrb[0].mxu0
          %v1005 = vpop.f32.mrb[0].mxu0
          %v1006 = vpop.f32.mrb[0].mxu0
          %1007 = vdwg.mxu0
          %s1008 = scalar_lea.vmem %s3, 16
          %v1009 = vld [vmem:[%s1008] sm:$0xf]
          %v1010 = vld [vmem:[%s1008 + $0x4] sm:$0xf]
          %v1013 = vunpack.c.l.b16 %v1009
          %v1014 = vunpack.c.l.b16 %v1010
          %v1015 = vpack.c.b16 %v1014, %v1013
          %v1018 = vsel %vm354, %v903, 0
          %1020 = vmatprep.subr.bf16.mxu0 0
          %1021 = vmatpush1.bf16.msra.mxu0 %v1015
          %1022 = vmatprep.subr.bf16.mxu0 0
          %1023 = vmatpush1.bf16.msra.mxu0 0
          %1024 = vmatprep.subr.bf16.mxu0 0
          %1025 = vmatpush1.bf16.msra.mxu0 0
          %1026 = vmatprep.subr.bf16.mxu0 0
          %1027 = vmatpush1.bf16.msra.mxu0 0
          %1028 = vmatprep.subr.bf16.mxu0 0
          %1029 = vmatpush1.bf16.msra.mxu0 0
          %1030 = vmatprep.subr.bf16.mxu0 0
          %1031 = vmatpush1.bf16.msra.mxu0 0
          %1032 = vmatprep.subr.bf16.mxu0 0
          %1033 = vmatpush1.bf16.msra.mxu0 0
          %1034 = vmatprep.subr.bf16.mxu0 0
          %1035 = vmatpush1.bf16.msra.mxu0 0
          %1036 = vmatprep.subr.bf16.mxu0 0
          %1037 = vmatpush1.bf16.msra.mxu0 0
          %1038 = vmatprep.subr.bf16.mxu0 0
          %1039 = vmatpush1.bf16.msra.mxu0 0
          %1040 = vmatprep.subr.bf16.mxu0 0
          %1041 = vmatpush1.bf16.msra.mxu0 0
          %1042 = vmatprep.subr.bf16.mxu0 0
          %1043 = vmatpush1.bf16.msra.mxu0 0
          %1044 = vmatprep.subr.bf16.mxu0 0
          %1045 = vmatpush1.bf16.msra.mxu0 0
          %1046 = vmatprep.subr.bf16.mxu0 0
          %1047 = vmatpush1.bf16.msra.mxu0 0
          %1048 = vmatprep.subr.bf16.mxu0 0
          %1049 = vmatpush1.bf16.msra.mxu0 0
          %1050 = vmatprep.subr.bf16.mxu0 0
          %1051 = vmatpush1.bf16.msra.mxu0 0
          %1052 = vmatprep.mubr.bf16.mxu0 0
          %1053 = vmatmul.mubr.bf16.gmra.mrb[0].mxu0 %v1018
          %v1054 = vpop.f32.mrb[0].mxu0
          %v1055 = vadd.f32 0.0, %v1054
          %v1056 = vpop.f32.mrb[0].mxu0
          %v1057 = vpop.f32.mrb[0].mxu0
          %v1058 = vpop.f32.mrb[0].mxu0
          %1059 = vdwg.mxu0
          %v1060 = vadd.f32 %v1003, %v1055
          %s1061 = scalar_lea.vmem %s3, 24
          %v1062 = vld [vmem:[%s1061] sm:$0xf]
          %v1063 = vld [vmem:[%s1061 + $0x4] sm:$0xf]
          %v1066 = vunpack.c.l.b16 %v1062
          %v1067 = vunpack.c.l.b16 %v1063
          %v1068 = vpack.c.b16 %v1067, %v1066
          %v1071 = vsel %vm354, %v904, 0
          %1073 = vmatprep.subr.bf16.mxu0 0
          %1074 = vmatpush1.bf16.msra.mxu0 %v1068
          %1075 = vmatprep.subr.bf16.mxu0 0
          %1076 = vmatpush1.bf16.msra.mxu0 0
          %1077 = vmatprep.subr.bf16.mxu0 0
          %1078 = vmatpush1.bf16.msra.mxu0 0
          %1079 = vmatprep.subr.bf16.mxu0 0
          %1080 = vmatpush1.bf16.msra.mxu0 0
          %1081 = vmatprep.subr.bf16.mxu0 0
          %1082 = vmatpush1.bf16.msra.mxu0 0
          %1083 = vmatprep.subr.bf16.mxu0 0
          %1084 = vmatpush1.bf16.msra.mxu0 0
          %1085 = vmatprep.subr.bf16.mxu0 0
          %1086 = vmatpush1.bf16.msra.mxu0 0
          %1087 = vmatprep.subr.bf16.mxu0 0
          %1088 = vmatpush1.bf16.msra.mxu0 0
          %1089 = vmatprep.subr.bf16.mxu0 0
          %1090 = vmatpush1.bf16.msra.mxu0 0
          %1091 = vmatprep.subr.bf16.mxu0 0
          %1092 = vmatpush1.bf16.msra.mxu0 0
          %1093 = vmatprep.subr.bf16.mxu0 0
          %1094 = vmatpush1.bf16.msra.mxu0 0
          %1095 = vmatprep.subr.bf16.mxu0 0
          %1096 = vmatpush1.bf16.msra.mxu0 0
          %1097 = vmatprep.subr.bf16.mxu0 0
          %1098 = vmatpush1.bf16.msra.mxu0 0
          %1099 = vmatprep.subr.bf16.mxu0 0
          %1100 = vmatpush1.bf16.msra.mxu0 0
          %1101 = vmatprep.subr.bf16.mxu0 0
          %1102 = vmatpush1.bf16.msra.mxu0 0
          %1103 = vmatprep.subr.bf16.mxu0 0
          %1104 = vmatpush1.bf16.msra.mxu0 0
          %1105 = vmatprep.mubr.bf16.mxu0 0
          %1106 = vmatmul.mubr.bf16.gmra.mrb[0].mxu0 %v1071
          %v1107 = vpop.f32.mrb[0].mxu0
          %v1108 = vadd.f32 0.0, %v1107
          %v1109 = vpop.f32.mrb[0].mxu0
          %v1110 = vpop.f32.mrb[0].mxu0
          %v1111 = vpop.f32.mrb[0].mxu0
          %1112 = vdwg.mxu0
          %v1113 = vadd.f32 %v1060, %v1108
          %v1114 = vld [vmem:[%s4] sm:$0x1]
          %v1116 = vlaneseq
          %v1117 = vshrl.u32 %v1116, 7
          %v1118 = vsub.s32 0, %v1117
          %v1119 = vrot.slane %v1114, %v1118
          %v1121 = vadd.f32 %v1113, %v1119
          %vm1122 = vcmask 261120
          %1123 = vst.msk [vmem:[%s296] sm:$0xff] %vm1122, %v1121
        $region48: #{_attention_forward.3} parent=39 // pred_fallthru
          _
        %s1124 = sand.u32 %s174, 1
        %s1125 = scalar_lea.sflag [#allocation6], %s1124
        %s1126 = sand.u32 %s174, 1
        %s1127 = smul.addr %s1126, 8
        %s1128 = scalar_lea.vmem [#allocation5], %s1127
        // Predicated region
        $region49: #{_attention_forward.3} parent=39 // pred_check
          %p1129 = pneg %p184
        $region50: #{_attention_forward.3} parent=39 // pred_check_branch
          %1131 = sbr.rel (%p1129) target = $region52
        $region51: #{_attention_forward.3} parent=39 // pred_region
          %s1133 = ssub.s32 128, 128
          %1134 = vsyncadd %s1125, %s1133
          %s1135 = sadd.s32 %s25, %s24
          %s1136 = smul.addr %s1135, 128
          %s1137 = scalar_lea.hbm %s5, %s1136
          %s1139 = sshll.u32 %s1128, 4
          %s1140 = int_to_ptr.vmem [resolvable:$true] %s1139
          %1142 = dma.vmem_to_hbm [thread:$0]  %s1140, 128, %s1137, %s1125
        $region52: #{_attention_forward.3} parent=39 // pred_fallthru
          _
      $region40: #{_attention_forward.3} parent=5 // pred_fallthru
        _
      %p1143 = scmp.le.s32.totalorder 2, %s14
      // Predicated region
      $region53: #{_attention_forward.3} parent=5 // pred_check
        %p1144 = pneg %p1143
      $region54: #{_attention_forward.3} parent=5 // pred_check_branch
        %1146 = sbr.rel (%p1144) target = $region56
      $region55: #{_attention_forward.3} parent=5 // pred_region
        %s1147 = ssub.s32 %s14, 2
        // Predicated region
        $region57: #{_attention_forward.3} parent=55 // pred_check
          %p1148 = pneg %p190
        $region58: #{_attention_forward.3} parent=55 // pred_check_branch
          %1150 = sbr.rel (%p1148) target = $region60
        $region59: #{_attention_forward.3} parent=55 // pred_region
          %s1151 = sand.u32 %s175, 1
          %s1152 = scalar_lea.sflag [#allocation6], %s1151
          %s1153 = sand.u32 %s175, 1
          %s1154 = smul.addr %s1153, 8
          %s1155 = scalar_lea.vmem [#allocation5], %s1154
          %1156 = dma.done %s1152, 128
        $region60: #{_attention_forward.3} parent=55 // pred_fallthru
          _
      $region56: #{_attention_forward.3} parent=5 // pred_fallthru
        _
    $region6: #{_attention_forward.3} parent=1 // loop_footer
      %s18 = sadd.s32 1, %s14
    $region7: #{_attention_forward.3} parent=1 // loop_footer_branch
      %13 = sbr.rel target = $region3
    $region8: #{_attention_forward.3} parent=1 // loop_exit
      _
    %1157 = vsyncpa [#allocation6], 1
    %s1158 = scalar_lea.sflag [#allocation6], 1
    %1159 = vsyncpa %s1158, 1

</llo_original>
